<compile_context>
chip_gen: v7x
topology: tpu7x:2x2x1
jax: 0.10.0
libtpu: 0.0.40
codegen_flags: <defaults>
</compile_context>

<pallas_src>
import functools
import math

import jax
import jax.numpy as jnp
from jax.experimental import pallas as pl
from jax.experimental.pallas import tpu as pltpu

EPS = 1e-5
VMEM_LIMIT_BYTES = 48 * 1024 * 1024      # raised scoped-VMEM budget (safe on v7x)
VMEM_TILE_BUDGET = 36 * 1024 * 1024      # target for pipeline buffers + fp32 temps


# ----------------------------------------------------------------------------
# helpers
# ----------------------------------------------------------------------------
def _round_up(v, m):
    return ((v + m - 1) // m) * m


def _sublane_multiple(dtype):
    # sublane packing: f32 -> 8 rows, bf16 -> 16, int8/fp8 -> 32
    return max(8, 32 // jnp.dtype(dtype).itemsize)


def _gelu_exact(x):
    # Exact (erf) GELU, matching torch.nn.GELU().  erf is evaluated with the
    # Abramowitz & Stegun 7.1.26 approximation (|err| < 1.5e-7), built only
    # from exp + mul/add so it lowers cleanly inside Mosaic (EUP + VPU).
    z = x * 0.7071067811865476                       # x / sqrt(2)
    a = jnp.abs(z)
    t = 1.0 / (1.0 + 0.3275911 * a)
    poly = t * (0.254829592 + t * (-0.284496736 + t * (1.421413741
             + t * (-1.453152027 + t * 1.061405429))))
    erf_a = 1.0 - poly * jnp.exp(-a * a)
    erf = jnp.where(z >= 0, erf_a, -erf_a)
    return 0.5 * x * (1.0 + erf)


def _pick_tiles(rows, k, n, in_dtype, w_dtype):
    """Pick (row_block, col_block) for a (rows,k)@(k,n) kernel under the VMEM budget."""
    in_b = jnp.dtype(in_dtype).itemsize
    w_b = jnp.dtype(w_dtype).itemsize
    mult = _sublane_multiple(in_dtype)

    def fits(rb, cb):
        need = (2 * in_b * rb * k            # activation tile (double buffered)
                + 2 * w_b * k * cb           # weight tile (double buffered)
                + 2 * in_b * rb * cb         # optional residual tile
                + 2 * in_b * rb * cb         # output tile
                + 4 * rb * k + 4 * rb * cb)  # fp32 working copies
        return need <= VMEM_TILE_BUDGET

    # Prefer the full output width (LN computed once per row tile, weight
    # VMEM-resident and never re-DMA'd); else lane-dense column tiles.
    for cb in [n] + [c for c in (512, 256, 128) if n % c == 0]:
        rb = 512
        while rb > mult and not fits(rb, cb):
            rb //= 2
        if fits(rb, cb):
            rb = max(rb, mult)
            return min(rb, _round_up(rows, mult)), cb
    # last resort: minimal tiles
    cb = 128 if n % 128 == 0 else n
    return min(mult, _round_up(rows, mult)), cb


def _pick_ffn_row_block(rows, h, in_dtype, w_dtype):
    """Row tile for the fully fused FFN kernel; None if weights don't fit VMEM."""
    in_b = jnp.dtype(in_dtype).itemsize
    w_b = jnp.dtype(w_dtype).itemsize
    mult = _sublane_multiple(in_dtype)

    def fits(rb):
        need = (2 * in_b * rb * h            # x1 tile (double buffered)
                + 2 * in_b * rb * h          # output tile (double buffered)
                + 4 * h                      # gamma
                + 2 * 2 * w_b * h * h        # fc1 + fc2 weights (double buffered)
                + 3 * 4 * rb * h)            # fp32 temps (x, hidden, y)
        return need <= VMEM_TILE_BUDGET

    rb = 1024
    while rb > mult and not fits(rb):
        rb //= 2
    if not fits(rb):
        return None
    rb = max(rb, mult)
    return min(rb, _round_up(rows, mult))


# ----------------------------------------------------------------------------
# kernel 1: fused LayerNorm (no bias, eps=1e-5) + matmul (+ optional GELU)
# ----------------------------------------------------------------------------
def _ln_matmul_kernel(x_ref, g_ref, w_ref, o_ref, *, apply_gelu):
    x = x_ref[...].astype(jnp.float32)                       # (rb, K)
    h_inv = 1.0 / x.shape[-1]
    s = jnp.sum(x, axis=-1, keepdims=True)                   # one-pass stats
    ss = jnp.sum(x * x, axis=-1, keepdims=True)
    mean = s * h_inv
    var = jnp.maximum(ss * h_inv - mean * mean, 0.0)
    inv = jax.lax.rsqrt(var + EPS)
    xn = (x - mean) * inv * g_ref[...]                       # (1, K) gamma broadcast
    acc = jnp.dot(xn, w_ref[...].astype(jnp.float32),
                  preferred_element_type=jnp.float32)
    if apply_gelu:
        acc = _gelu_exact(acc)
    o_ref[...] = acc.astype(o_ref.dtype)


def ln_matmul(x2, gamma, w, apply_gelu=False):
    """out = [GELU]( LayerNorm(x2, gamma, eps=1e-5, bias=None) @ w )."""
    rows, h = x2.shape
    n = w.shape[1]
    rb, cb = _pick_tiles(rows, h, n, x2.dtype, w.dtype)
    rows_p = _round_up(rows, rb)
    if rows_p != rows:
        x2 = jnp.pad(x2, ((0, rows_p - rows), (0, 0)))
    grid = (rows_p // rb, n // cb)
    out = pl.pallas_call(
        functools.partial(_ln_matmul_kernel, apply_gelu=apply_gelu),
        out_shape=jax.ShapeDtypeStruct((rows_p, n), x2.dtype),
        grid_spec=pltpu.PrefetchScalarGridSpec(
            num_scalar_prefetch=0,
            grid=grid,
            in_specs=[
                pl.BlockSpec((rb, h), lambda i, j: (i, 0)),   # x tile (reused across j)
                pl.BlockSpec((1, h), lambda i, j: (0, 0)),    # gamma (VMEM-resident)
                pl.BlockSpec((h, cb), lambda i, j: (0, j)),   # weight column tile
            ],
            out_specs=pl.BlockSpec((rb, cb), lambda i, j: (i, j)),
        ),
        compiler_params=pltpu.CompilerParams(
            dimension_semantics=("parallel", "parallel"),
            vmem_limit_bytes=VMEM_LIMIT_BYTES,
        ),
    )(x2, gamma.astype(jnp.float32).reshape(1, h), w)
    return out[:rows] if rows_p != rows else out


# ----------------------------------------------------------------------------
# kernel 2: matmul with fused residual add
# ----------------------------------------------------------------------------
def _matmul_residual_kernel(a_ref, w_ref, r_ref, o_ref):
    acc = jnp.dot(a_ref[...].astype(jnp.float32),
                  w_ref[...].astype(jnp.float32),
                  preferred_element_type=jnp.float32)
    o_ref[...] = (r_ref[...].astype(jnp.float32) + acc).astype(o_ref.dtype)


def matmul_residual(a, w, res):
    """out = res + a @ w."""
    rows, k = a.shape
    n = w.shape[1]
    rb, cb = _pick_tiles(rows, k, n, a.dtype, w.dtype)
    rows_p = _round_up(rows, rb)
    if rows_p != rows:
        a = jnp.pad(a, ((0, rows_p - rows), (0, 0)))
        res = jnp.pad(res, ((0, rows_p - rows), (0, 0)))
    grid = (rows_p // rb, n // cb)
    out = pl.pallas_call(
        _matmul_residual_kernel,
        out_shape=jax.ShapeDtypeStruct((rows_p, n), a.dtype),
        grid_spec=pltpu.PrefetchScalarGridSpec(
            num_scalar_prefetch=0,
            grid=grid,
            in_specs=[
                pl.BlockSpec((rb, k), lambda i, j: (i, 0)),
                pl.BlockSpec((k, cb), lambda i, j: (0, j)),
                pl.BlockSpec((rb, cb), lambda i, j: (i, j)),
            ],
            out_specs=pl.BlockSpec((rb, cb), lambda i, j: (i, j)),
        ),
        compiler_params=pltpu.CompilerParams(
            dimension_semantics=("parallel", "parallel"),
            vmem_limit_bytes=VMEM_LIMIT_BYTES,
        ),
    )(a, w, res)
    return out[:rows] if rows_p != rows else out


# ----------------------------------------------------------------------------
# kernel 3: per-(batch, head) softmax attention with key-padding bias
# ----------------------------------------------------------------------------
def _attention_kernel(q_ref, k_ref, v_ref, bias_ref, o_ref, *, scale):
    q = q_ref[...].astype(jnp.float32)                       # (T, hd)
    k = k_ref[...].astype(jnp.float32)
    v = v_ref[...].astype(jnp.float32)
    s = jax.lax.dot_general(q, k, (((1,), (1,)), ((), ())),  # q @ k^T -> (T, T)
                            preferred_element_type=jnp.float32) * scale
    s = s + bias_ref[...]                                    # (1, T) key-padding bias
    m = jnp.max(s, axis=-1, keepdims=True)
    p = jnp.exp(s - m)
    l = jnp.sum(p, axis=-1, keepdims=True)
    o = jnp.dot(p, v, preferred_element_type=jnp.float32) * (1.0 / l)
    o_ref[...] = o.astype(o_ref.dtype)


def attention(q, k, v, mask_bias):
    """q, k, v: (B, nh, T, hd); mask_bias: (B, 1, T) float32 (0 keep, -1e30 drop)."""
    # TODO(synk): switch to a flash-style KV-tiled online-softmax kernel for long
    # sequences; full-sequence blocks are fine at these T and keep the code simple.
    B, nh, T, hd = q.shape
    kern = functools.partial(_attention_kernel, scale=1.0 / math.sqrt(hd))
    return pl.pallas_call(
        kern,
        out_shape=jax.ShapeDtypeStruct((B, nh, T, hd), q.dtype),
        grid_spec=pltpu.PrefetchScalarGridSpec(
            num_scalar_prefetch=0,
            grid=(B, nh),
            in_specs=[
                pl.BlockSpec((None, None, T, hd), lambda b, h: (b, h, 0, 0)),
                pl.BlockSpec((None, None, T, hd), lambda b, h: (b, h, 0, 0)),
                pl.BlockSpec((None, None, T, hd), lambda b, h: (b, h, 0, 0)),
                pl.BlockSpec((None, 1, T), lambda b, h: (b, 0, 0)),
            ],
            out_specs=pl.BlockSpec((None, None, T, hd), lambda b, h: (b, h, 0, 0)),
        ),
        compiler_params=pltpu.CompilerParams(
            dimension_semantics=("parallel", "parallel"),
            vmem_limit_bytes=VMEM_LIMIT_BYTES,
        ),
    )(q, k, v, mask_bias)


# ----------------------------------------------------------------------------
# kernel 4: fully fused FFN block: ln_2 + fc1 + exact GELU + fc2 + residual
# ----------------------------------------------------------------------------
def _ffn_kernel(x_ref, g_ref, w1_ref, w2_ref, o_ref):
    x = x_ref[...].astype(jnp.float32)                       # (rb, H), also residual
    h_inv = 1.0 / x.shape[-1]
    s = jnp.sum(x, axis=-1, keepdims=True)
    ss = jnp.sum(x * x, axis=-1, keepdims=True)
    mean = s * h_inv
    var = jnp.maximum(ss * h_inv - mean * mean, 0.0)
    xn = (x - mean) * jax.lax.rsqrt(var + EPS) * g_ref[...]
    h = jnp.dot(xn, w1_ref[...].astype(jnp.float32),
                preferred_element_type=jnp.float32)
    h = _gelu_exact(h)
    y = jnp.dot(h, w2_ref[...].astype(jnp.float32),
                preferred_element_type=jnp.float32)
    o_ref[...] = (x + y).astype(o_ref.dtype)


def ffn_fused(x1, gamma, w1, w2, rb):
    rows, h = x1.shape
    rows_p = _round_up(rows, rb)
    if rows_p != rows:
        x1 = jnp.pad(x1, ((0, rows_p - rows), (0, 0)))
    grid = (rows_p // rb,)
    out = pl.pallas_call(
        _ffn_kernel,
        out_shape=jax.ShapeDtypeStruct((rows_p, h), x1.dtype),
        grid_spec=pltpu.PrefetchScalarGridSpec(
            num_scalar_prefetch=0,
            grid=grid,
            in_specs=[
                pl.BlockSpec((rb, h), lambda i: (i, 0)),      # x1 row tile
                pl.BlockSpec((1, h), lambda i: (0, 0)),       # gamma (resident)
                pl.BlockSpec((h, h), lambda i: (0, 0)),       # fc1 weight (resident)
                pl.BlockSpec((h, h), lambda i: (0, 0)),       # fc2 weight (resident)
            ],
            out_specs=pl.BlockSpec((rb, h), lambda i: (i, 0)),
        ),
        compiler_params=pltpu.CompilerParams(
            dimension_semantics=("parallel",),
            vmem_limit_bytes=VMEM_LIMIT_BYTES,
        ),
    )(x1, gamma.astype(jnp.float32).reshape(1, h), w1, w2)
    return out[:rows] if rows_p != rows else out


# ----------------------------------------------------------------------------
# full TransformerLayer forward (eval mode)
# ----------------------------------------------------------------------------
@functools.partial(jax.jit, static_argnames=("num_heads",))
def transformer_layer_forward(x, mask, ln1_w, w_qkv, w_proj, ln2_w, w_fc1, w_fc2,
                              *, num_heads):
    B, T, H = x.shape
    assert H % num_heads == 0
    hd = H // num_heads
    rows = B * T
    x2 = x.reshape(rows, H)

    # --- attention block: ln_1 fused into the QKV projection ---
    qkv = ln_matmul(x2, ln1_w, w_qkv)                        # (rows, 3H)
    qkv = qkv.reshape(B, T, 3, num_heads, hd)
    q = qkv[:, :, 0].transpose(0, 2, 1, 3)                   # (B, nh, T, hd)
    k = qkv[:, :, 1].transpose(0, 2, 1, 3)
    v = qkv[:, :, 2].transpose(0, 2, 1, 3)

    # mask: True = valid token (attn_mask = ~(~mask) = mask in the torch module)
    mask_bias = jnp.where(mask, 0.0, -1e30).astype(jnp.float32).reshape(B, 1, T)
    y = attention(q, k, v, mask_bias)                        # (B, nh, T, hd)
    y2 = y.transpose(0, 2, 1, 3).reshape(rows, H)

    # attention_dropout / stochastic_depth are identity in eval mode (p = 0).
    x1 = matmul_residual(y2, w_proj, x2)                     # x + attn_out @ W_proj

    # --- FFN block ---
    rb_ffn = _pick_ffn_row_block(rows, H, x1.dtype, w_fc1.dtype)
    if rb_ffn is not None:
        # fully fused: ln_2 + fc1 + exact GELU + fc2 + residual, hidden stays in VMEM
        out = ffn_fused(x1, ln2_w, w_fc1, w_fc2, rb_ffn)
    else:
        # fallback when the FFN weights don't fit VMEM: ln_2 + fc1 + GELU fused,
        # then fc2 with the residual fused into the epilogue.
        h1 = ln_matmul(x1, ln2_w, w_fc1, apply_gelu=True)
        out = matmul_residual(h1, w_fc2, x1)
    return out.reshape(B, T, H)


# ----------------------------------------------------------------------------
# pure-JAX reference (mirrors the PyTorch module in eval mode)
# ----------------------------------------------------------------------------
def _reference(x, mask, ln1_w, w_qkv, w_proj, ln2_w, w_fc1, w_fc2, num_heads):
    B, T, H = x.shape
    hd = H // num_heads

    def ln(z, g):
        mu = jnp.mean(z, axis=-1, keepdims=True)
        var = jnp.mean((z - mu) ** 2, axis=-1, keepdims=True)
        return (z - mu) / jnp.sqrt(var + EPS) * g

    def heads(z):
        return z.reshape(B, T, num_heads, hd).transpose(0, 2, 1, 3)

    qkv = ln(x, ln1_w) @ w_qkv
    q, k, v = (heads(t) for t in jnp.split(qkv, 3, axis=-1))
    s = jnp.einsum("bhqd,bhkd->bhqk", q, k) / jnp.sqrt(jnp.float32(hd))
    s = jnp.where(mask[:, None, None, :], s, -jnp.inf)
    p = jax.nn.softmax(s, axis=-1)
    y = jnp.einsum("bhqk,bhkd->bhqd", p, v).transpose(0, 2, 1, 3).reshape(B, T, H)
    x1 = x + y @ w_proj
    f = jax.nn.gelu(ln(x1, ln2_w) @ w_fc1, approximate=False)
    return x1 + f @ w_fc2


if __name__ == "__main__":
    B, T, H, NH = 2, 8, 32, 4
    key = jax.random.PRNGKey(0)
    k_x, k_qkv, k_proj, k_fc1, k_fc2, k_ln1, k_ln2 = jax.random.split(key, 7)

    x = jax.random.normal(k_x, (B, T, H), dtype=jnp.float32)
    # key-padding mask: True = valid token (second batch has 2 padded positions)
    mask = jnp.array([[True] * T, [True] * (T - 2) + [False] * 2])

    ln1_w = 1.0 + 0.1 * jax.random.normal(k_ln1, (H,), dtype=jnp.float32)
    ln2_w = 1.0 + 0.1 * jax.random.normal(k_ln2, (H,), dtype=jnp.float32)
    w_qkv = 0.02 * jax.random.normal(k_qkv, (H, 3 * H), dtype=jnp.float32)
    w_proj = 0.02 * jax.random.normal(k_proj, (H, H), dtype=jnp.float32)
    w_fc1 = 0.02 * jax.random.normal(k_fc1, (H, H), dtype=jnp.float32)
    w_fc2 = 0.02 * jax.random.normal(k_fc2, (H, H), dtype=jnp.float32)

    out = transformer_layer_forward(x, mask, ln1_w, w_qkv, w_proj, ln2_w,
                                    w_fc1, w_fc2, num_heads=NH)
    out = jax.block_until_ready(out)

    ref = _reference(x, mask, ln1_w, w_qkv, w_proj, ln2_w, w_fc1, w_fc2, NH)
    assert out.shape == (B, T, H)
    assert bool(jnp.all(jnp.isfinite(out)))
    max_err = float(jnp.max(jnp.abs(out - ref)))
    assert jnp.allclose(out, ref, atol=2e-3, rtol=2e-3), f"max|err|={max_err}"

    print("KERNEL_OK")
</pallas_src>

<mosaic_0001>
module attributes {stable_mosaic.version = 11 : i64} {
  func.func @_ln_matmul_kernel(%arg0: i32, %arg1: i32, %arg2: memref<16x32xf32, #tpu.memory_space<vmem>>, %arg3: memref<1x32xf32, #tpu.memory_space<vmem>>, %arg4: memref<32x96xf32, #tpu.memory_space<vmem>>, %arg5: memref<16x96xf32, #tpu.memory_space<vmem>>) attributes {dimension_semantics = [#tpu.dimension_semantics<parallel>, #tpu.dimension_semantics<parallel>], iteration_bounds = array<i64: 1, 1>, scalar_prefetch = 0 : i64, scratch_operands = 0 : i64, tpu.core_type = #tpu.core_type<tc>, window_params = [{transform_indices = @transform_0, window_bounds = array<i64: 16, 32>}, {pipeline_mode = #tpu.pipeline_mode<synchronous>, transform_indices = @transform_1, window_bounds = array<i64: 1, 32>}, {transform_indices = @transform_2, window_bounds = array<i64: 32, 96>}, {transform_indices = @transform_3, window_bounds = array<i64: 16, 96>}]} {
    %c0 = arith.constant 0 : index
    %c0_0 = arith.constant 0 : index
    %0 = vector.load %arg2[%c0, %c0_0] : memref<16x32xf32, #tpu.memory_space<vmem>>, vector<16x32xf32>
    %cst = arith.constant dense<0.000000e+00> : vector<16xf32>
    %1 = vector.multi_reduction <add>, %0, %cst [1] : vector<16x32xf32> to vector<16xf32>
    %2 = vector.shape_cast %1 : vector<16xf32> to vector<16x1xf32>
    %3 = arith.mulf %0, %0 : vector<16x32xf32>
    %cst_1 = arith.constant dense<0.000000e+00> : vector<16xf32>
    %4 = vector.multi_reduction <add>, %3, %cst_1 [1] : vector<16x32xf32> to vector<16xf32>
    %5 = vector.shape_cast %4 : vector<16xf32> to vector<16x1xf32>
    %cst_2 = arith.constant 3.125000e-02 : f32
    %6 = vector.broadcast %cst_2 : f32 to vector<16x1xf32>
    %7 = arith.mulf %2, %6 : vector<16x1xf32>
    %cst_3 = arith.constant 3.125000e-02 : f32
    %8 = vector.broadcast %cst_3 : f32 to vector<16x1xf32>
    %9 = arith.mulf %5, %8 : vector<16x1xf32>
    %10 = arith.mulf %7, %7 : vector<16x1xf32>
    %11 = arith.subf %9, %10 : vector<16x1xf32>
    %cst_4 = arith.constant 0.000000e+00 : f32
    %12 = vector.broadcast %cst_4 : f32 to vector<16x1xf32>
    %13 = arith.maximumf %11, %12 : vector<16x1xf32>
    %cst_5 = arith.constant 9.99999974E-6 : f32
    %14 = vector.broadcast %cst_5 : f32 to vector<16x1xf32>
    %15 = arith.addf %13, %14 : vector<16x1xf32>
    %16 = math.rsqrt %15 : vector<16x1xf32>
    %17 = vector.broadcast %7 : vector<16x1xf32> to vector<16x32xf32>
    %18 = arith.subf %0, %17 : vector<16x32xf32>
    %19 = vector.broadcast %16 : vector<16x1xf32> to vector<16x32xf32>
    %20 = arith.mulf %18, %19 : vector<16x32xf32>
    %c0_6 = arith.constant 0 : index
    %c0_7 = arith.constant 0 : index
    %21 = vector.load %arg3[%c0_6, %c0_7] : memref<1x32xf32, #tpu.memory_space<vmem>>, vector<1x32xf32>
    %22 = vector.broadcast %21 : vector<1x32xf32> to vector<16x32xf32>
    %23 = arith.mulf %20, %22 : vector<16x32xf32>
    %c0_8 = arith.constant 0 : index
    %c0_9 = arith.constant 0 : index
    %24 = vector.load %arg4[%c0_8, %c0_9] : memref<32x96xf32, #tpu.memory_space<vmem>>, vector<32x96xf32>
    %cst_10 = arith.constant dense<0.000000e+00> : vector<16x96xf32>
    %25 = tpu.matmul %23, %24, %cst_10 {dimension_numbers = #tpu.dot_dimension_numbers<[1], [0], [0], [1], [0, 0, 1, 1], [], []>} : vector<16x32xf32>, vector<32x96xf32>, vector<16x96xf32> -> vector<16x96xf32>
    %c0_11 = arith.constant 0 : index
    %c0_12 = arith.constant 0 : index
    %26 = vector.load %arg5[%c0_11, %c0_12] : memref<16x96xf32, #tpu.memory_space<vmem>>, vector<16x96xf32>
    tpu.vector_store %arg5[%c0_11, %c0_12], %25 {strides = array<i32>} : memref<16x96xf32, #tpu.memory_space<vmem>>, vector<16x96xf32>,
    return
  }
  func.func @transform_0(%arg0: i32, %arg1: i32) -> (i32, i32) {
    %c0_i32 = arith.constant 0 : i32
    %c0_i32_0 = arith.constant 0 : i32
    return %arg0, %c0_i32 : i32, i32
  }
  func.func @transform_1(%arg0: i32, %arg1: i32) -> (i32, i32) {
    %c0_i32 = arith.constant 0 : i32
    %c0_i32_0 = arith.constant 0 : i32
    %c0_i32_1 = arith.constant 0 : i32
    return %c0_i32, %c0_i32_0 : i32, i32
  }
  func.func @transform_2(%arg0: i32, %arg1: i32) -> (i32, i32) {
    %c0_i32 = arith.constant 0 : i32
    %c0_i32_0 = arith.constant 0 : i32
    return %c0_i32, %arg1 : i32, i32
  }
  func.func @transform_3(%arg0: i32, %arg1: i32) -> (i32, i32) {
    %c0_i32 = arith.constant 0 : i32
    return %arg0, %arg1 : i32, i32
  }
}

module attributes {stable_mosaic.version = 11 : i64} {
  func.func @_ffn_kernel(%arg0: i32, %arg1: memref<16x32xf32, #tpu.memory_space<vmem>>, %arg2: memref<1x32xf32, #tpu.memory_space<vmem>>, %arg3: memref<32x32xf32, #tpu.memory_space<vmem>>, %arg4: memref<32x32xf32, #tpu.memory_space<vmem>>, %arg5: memref<16x32xf32, #tpu.memory_space<vmem>>) attributes {dimension_semantics = [#tpu.dimension_semantics<parallel>], iteration_bounds = array<i64: 1>, scalar_prefetch = 0 : i64, scratch_operands = 0 : i64, tpu.core_type = #tpu.core_type<tc>, window_params = [{transform_indices = @transform_0, window_bounds = array<i64: 16, 32>}, {pipeline_mode = #tpu.pipeline_mode<synchronous>, transform_indices = @transform_1, window_bounds = array<i64: 1, 32>}, {pipeline_mode = #tpu.pipeline_mode<synchronous>, transform_indices = @transform_2, window_bounds = array<i64: 32, 32>}, {pipeline_mode = #tpu.pipeline_mode<synchronous>, transform_indices = @transform_3, window_bounds = array<i64: 32, 32>}, {transform_indices = @transform_4, window_bounds = array<i64: 16, 32>}]} {
    %c0 = arith.constant 0 : index
    %c0_0 = arith.constant 0 : index
    %0 = vector.load %arg1[%c0, %c0_0] : memref<16x32xf32, #tpu.memory_space<vmem>>, vector<16x32xf32>
    %cst = arith.constant dense<0.000000e+00> : vector<16xf32>
    %1 = vector.multi_reduction <add>, %0, %cst [1] : vector<16x32xf32> to vector<16xf32>
    %2 = vector.shape_cast %1 : vector<16xf32> to vector<16x1xf32>
    %3 = arith.mulf %0, %0 : vector<16x32xf32>
    %cst_1 = arith.constant dense<0.000000e+00> : vector<16xf32>
    %4 = vector.multi_reduction <add>, %3, %cst_1 [1] : vector<16x32xf32> to vector<16xf32>
    %5 = vector.shape_cast %4 : vector<16xf32> to vector<16x1xf32>
    %cst_2 = arith.constant 3.125000e-02 : f32
    %6 = vector.broadcast %cst_2 : f32 to vector<16x1xf32>
    %7 = arith.mulf %2, %6 : vector<16x1xf32>
    %cst_3 = arith.constant 3.125000e-02 : f32
    %8 = vector.broadcast %cst_3 : f32 to vector<16x1xf32>
    %9 = arith.mulf %5, %8 : vector<16x1xf32>
    %10 = arith.mulf %7, %7 : vector<16x1xf32>
    %11 = arith.subf %9, %10 : vector<16x1xf32>
    %cst_4 = arith.constant 0.000000e+00 : f32
    %12 = vector.broadcast %cst_4 : f32 to vector<16x1xf32>
    %13 = arith.maximumf %11, %12 : vector<16x1xf32>
    %14 = vector.broadcast %7 : vector<16x1xf32> to vector<16x32xf32>
    %15 = arith.subf %0, %14 : vector<16x32xf32>
    %cst_5 = arith.constant 9.99999974E-6 : f32
    %16 = vector.broadcast %cst_5 : f32 to vector<16x1xf32>
    %17 = arith.addf %13, %16 : vector<16x1xf32>
    %18 = math.rsqrt %17 : vector<16x1xf32>
    %19 = vector.broadcast %18 : vector<16x1xf32> to vector<16x32xf32>
    %20 = arith.mulf %15, %19 : vector<16x32xf32>
    %c0_6 = arith.constant 0 : index
    %c0_7 = arith.constant 0 : index
    %21 = vector.load %arg2[%c0_6, %c0_7] : memref<1x32xf32, #tpu.memory_space<vmem>>, vector<1x32xf32>
    %22 = vector.broadcast %21 : vector<1x32xf32> to vector<16x32xf32>
    %23 = arith.mulf %20, %22 : vector<16x32xf32>
    %c0_8 = arith.constant 0 : index
    %c0_9 = arith.constant 0 : index
    %24 = vector.load %arg3[%c0_8, %c0_9] : memref<32x32xf32, #tpu.memory_space<vmem>>, vector<32x32xf32>
    %cst_10 = arith.constant dense<0.000000e+00> : vector<16x32xf32>
    %25 = tpu.matmul %23, %24, %cst_10 {dimension_numbers = #tpu.dot_dimension_numbers<[1], [0], [0], [1], [0, 0, 1, 1], [], []>} : vector<16x32xf32>, vector<32x32xf32>, vector<16x32xf32> -> vector<16x32xf32>
    %cst_11 = arith.constant 0.707106769 : f32
    %26 = vector.broadcast %cst_11 : f32 to vector<16x32xf32>
    %27 = arith.mulf %25, %26 : vector<16x32xf32>
    %28 = math.absf %27 : vector<16x32xf32>
    %cst_12 = arith.constant 0.327591091 : f32
    %29 = vector.broadcast %cst_12 : f32 to vector<16x32xf32>
    %30 = arith.mulf %29, %28 : vector<16x32xf32>
    %cst_13 = arith.constant 1.000000e+00 : f32
    %31 = vector.broadcast %cst_13 : f32 to vector<16x32xf32>
    %32 = arith.addf %31, %30 : vector<16x32xf32>
    %cst_14 = arith.constant 1.000000e+00 : f32
    %33 = vector.broadcast %cst_14 : f32 to vector<16x32xf32>
    %34 = arith.divf %33, %32 : vector<16x32xf32>
    %cst_15 = arith.constant 1.06140542 : f32
    %35 = vector.broadcast %cst_15 : f32 to vector<16x32xf32>
    %36 = arith.mulf %34, %35 : vector<16x32xf32>
    %cst_16 = arith.constant -1.45315206 : f32
    %37 = vector.broadcast %cst_16 : f32 to vector<16x32xf32>
    %38 = arith.addf %37, %36 : vector<16x32xf32>
    %39 = arith.mulf %34, %38 : vector<16x32xf32>
    %cst_17 = arith.constant 1.42141378 : f32
    %40 = vector.broadcast %cst_17 : f32 to vector<16x32xf32>
    %41 = arith.addf %40, %39 : vector<16x32xf32>
    %42 = arith.mulf %34, %41 : vector<16x32xf32>
    %cst_18 = arith.constant -0.284496725 : f32
    %43 = vector.broadcast %cst_18 : f32 to vector<16x32xf32>
    %44 = arith.addf %43, %42 : vector<16x32xf32>
    %45 = arith.mulf %34, %44 : vector<16x32xf32>
    %cst_19 = arith.constant 0.254829586 : f32
    %46 = vector.broadcast %cst_19 : f32 to vector<16x32xf32>
    %47 = arith.addf %46, %45 : vector<16x32xf32>
    %48 = arith.mulf %34, %47 : vector<16x32xf32>
    %cst_20 = arith.constant 0.000000e+00 : f32
    %49 = vector.broadcast %cst_20 : f32 to vector<16x32xf32>
    %50 = arith.subf %49, %28 : vector<16x32xf32>
    %51 = arith.mulf %50, %28 : vector<16x32xf32>
    %52 = math.exp %51 : vector<16x32xf32>
    %53 = arith.mulf %48, %52 : vector<16x32xf32>
    %cst_21 = arith.constant 1.000000e+00 : f32
    %54 = vector.broadcast %cst_21 : f32 to vector<16x32xf32>
    %55 = arith.subf %54, %53 : vector<16x32xf32>
    %cst_22 = arith.constant 0.000000e+00 : f32
    %56 = vector.broadcast %cst_22 : f32 to vector<16x32xf32>
    %57 = arith.cmpf oge, %27, %56 : vector<16x32xf32>
    %cst_23 = arith.constant 0.000000e+00 : f32
    %58 = vector.broadcast %cst_23 : f32 to vector<16x32xf32>
    %59 = arith.subf %58, %55 : vector<16x32xf32>
    %60 = arith.select %57, %55, %59 : vector<16x32xi1>, vector<16x32xf32>
    %cst_24 = arith.constant 5.000000e-01 : f32
    %61 = vector.broadcast %cst_24 : f32 to vector<16x32xf32>
    %62 = arith.mulf %61, %25 : vector<16x32xf32>
    %cst_25 = arith.constant 1.000000e+00 : f32
    %63 = vector.broadcast %cst_25 : f32 to vector<16x32xf32>
    %64 = arith.addf %63, %60 : vector<16x32xf32>
    %65 = arith.mulf %62, %64 : vector<16x32xf32>
    %c0_26 = arith.constant 0 : index
    %c0_27 = arith.constant 0 : index
    %66 = vector.load %arg4[%c0_26, %c0_27] : memref<32x32xf32, #tpu.memory_space<vmem>>, vector<32x32xf32>
    %cst_28 = arith.constant dense<0.000000e+00> : vector<16x32xf32>
    %67 = tpu.matmul %65, %66, %cst_28 {dimension_numbers = #tpu.dot_dimension_numbers<[1], [0], [0], [1], [0, 0, 1, 1], [], []>} : vector<16x32xf32>, vector<32x32xf32>, vector<16x32xf32> -> vector<16x32xf32>
    %68 = arith.addf %0, %67 : vector<16x32xf32>
    %c0_29 = arith.constant 0 : index
    %c0_30 = arith.constant 0 : index
    %69 = vector.load %arg5[%c0_29, %c0_30] : memref<16x32xf32, #tpu.memory_space<vmem>>, vector<16x32xf32>
    tpu.vector_store %arg5[%c0_29, %c0_30], %68 {strides = array<i32>} : memref<16x32xf32, #tpu.memory_space<vmem>>, vector<16x32xf32>,
    return
  }
  func.func @transform_0(%arg0: i32) -> (i32, i32) {
    %c0_i32 = arith.constant 0 : i32
    %c0_i32_0 = arith.constant 0 : i32
    return %arg0, %c0_i32 : i32, i32
  }
  func.func @transform_1(%arg0: i32) -> (i32, i32) {
    %c0_i32 = arith.constant 0 : i32
    %c0_i32_0 = arith.constant 0 : i32
    %c0_i32_1 = arith.constant 0 : i32
    return %c0_i32, %c0_i32_0 : i32, i32
  }
  func.func @transform_2(%arg0: i32) -> (i32, i32) {
    %c0_i32 = arith.constant 0 : i32
    %c0_i32_0 = arith.constant 0 : i32
    %c0_i32_1 = arith.constant 0 : i32
    return %c0_i32, %c0_i32_0 : i32, i32
  }
  func.func @transform_3(%arg0: i32) -> (i32, i32) {
    %c0_i32 = arith.constant 0 : i32
    %c0_i32_0 = arith.constant 0 : i32
    %c0_i32_1 = arith.constant 0 : i32
    return %c0_i32, %c0_i32_0 : i32, i32
  }
  func.func @transform_4(%arg0: i32) -> (i32, i32) {
    %c0_i32 = arith.constant 0 : i32
    %c0_i32_0 = arith.constant 0 : i32
    return %arg0, %c0_i32 : i32, i32
  }
}

module attributes {stable_mosaic.version = 11 : i64} {
  func.func @_attention_kernel(%arg0: i32, %arg1: i32, %arg2: memref<1x1x8x8xf32, #tpu.memory_space<vmem>>, %arg3: memref<1x1x8x8xf32, #tpu.memory_space<vmem>>, %arg4: memref<1x1x8x8xf32, #tpu.memory_space<vmem>>, %arg5: memref<1x1x8xf32, #tpu.memory_space<vmem>>, %arg6: memref<1x1x8x8xf32, #tpu.memory_space<vmem>>) attributes {dimension_semantics = [#tpu.dimension_semantics<parallel>, #tpu.dimension_semantics<parallel>], iteration_bounds = array<i64: 2, 4>, scalar_prefetch = 0 : i64, scratch_operands = 0 : i64, tpu.core_type = #tpu.core_type<tc>, window_params = [{transform_indices = @transform_0, window_bounds = array<i64: 1, 1, 8, 8>}, {transform_indices = @transform_1, window_bounds = array<i64: 1, 1, 8, 8>}, {transform_indices = @transform_2, window_bounds = array<i64: 1, 1, 8, 8>}, {transform_indices = @transform_3, window_bounds = array<i64: 1, 1, 8>}, {transform_indices = @transform_4, window_bounds = array<i64: 1, 1, 8, 8>}]} {
    %c0 = arith.constant 0 : index
    %c0_0 = arith.constant 0 : index
    %c0_1 = arith.constant 0 : index
    %c0_2 = arith.constant 0 : index
    %0 = vector.load %arg2[%c0, %c0_0, %c0_1, %c0_2] : memref<1x1x8x8xf32, #tpu.memory_space<vmem>>, vector<1x1x8x8xf32>
    %1 = vector.shape_cast %0 : vector<1x1x8x8xf32> to vector<8x8xf32>
    %c0_3 = arith.constant 0 : index
    %c0_4 = arith.constant 0 : index
    %c0_5 = arith.constant 0 : index
    %c0_6 = arith.constant 0 : index
    %2 = vector.load %arg3[%c0_3, %c0_4, %c0_5, %c0_6] : memref<1x1x8x8xf32, #tpu.memory_space<vmem>>, vector<1x1x8x8xf32>
    %3 = vector.shape_cast %2 : vector<1x1x8x8xf32> to vector<8x8xf32>
    %c0_7 = arith.constant 0 : index
    %c0_8 = arith.constant 0 : index
    %c0_9 = arith.constant 0 : index
    %c0_10 = arith.constant 0 : index
    %4 = vector.load %arg4[%c0_7, %c0_8, %c0_9, %c0_10] : memref<1x1x8x8xf32, #tpu.memory_space<vmem>>, vector<1x1x8x8xf32>
    %5 = vector.shape_cast %4 : vector<1x1x8x8xf32> to vector<8x8xf32>
    %cst = arith.constant dense<0.000000e+00> : vector<8x8xf32>
    %6 = tpu.matmul %1, %3, %cst {dimension_numbers = #tpu.dot_dimension_numbers<[1], [1], [0], [0], [0, 0, 1, 0], [], []>} : vector<8x8xf32>, vector<8x8xf32>, vector<8x8xf32> -> vector<8x8xf32>
    %cst_11 = arith.constant 0.353553385 : f32
    %7 = vector.broadcast %cst_11 : f32 to vector<8x8xf32>
    %8 = arith.mulf %6, %7 : vector<8x8xf32>
    %c0_12 = arith.constant 0 : index
    %c0_13 = arith.constant 0 : index
    %c0_14 = arith.constant 0 : index
    %9 = vector.load %arg5[%c0_12, %c0_13, %c0_14] : memref<1x1x8xf32, #tpu.memory_space<vmem>>, vector<1x1x8xf32>
    %10 = vector.shape_cast %9 : vector<1x1x8xf32> to vector<1x8xf32>
    %11 = vector.broadcast %10 : vector<1x8xf32> to vector<8x8xf32>
    %12 = arith.addf %8, %11 : vector<8x8xf32>
    %cst_15 = arith.constant dense<0xFF800000> : vector<8xf32>
    %13 = vector.multi_reduction <maximumf>, %12, %cst_15 [1] : vector<8x8xf32> to vector<8xf32>
    %14 = vector.shape_cast %13 : vector<8xf32> to vector<8x1xf32>
    %15 = vector.broadcast %14 : vector<8x1xf32> to vector<8x8xf32>
    %16 = arith.subf %12, %15 : vector<8x8xf32>
    %17 = math.exp %16 : vector<8x8xf32>
    %cst_16 = arith.constant dense<0.000000e+00> : vector<8xf32>
    %18 = vector.multi_reduction <add>, %17, %cst_16 [1] : vector<8x8xf32> to vector<8xf32>
    %19 = vector.shape_cast %18 : vector<8xf32> to vector<8x1xf32>
    %cst_17 = arith.constant dense<0.000000e+00> : vector<8x8xf32>
    %20 = tpu.matmul %17, %5, %cst_17 {dimension_numbers = #tpu.dot_dimension_numbers<[1], [0], [0], [1], [0, 0, 1, 1], [], []>} : vector<8x8xf32>, vector<8x8xf32>, vector<8x8xf32> -> vector<8x8xf32>
    %cst_18 = arith.constant 1.000000e+00 : f32
    %21 = vector.broadcast %cst_18 : f32 to vector<8x1xf32>
    %22 = arith.divf %21, %19 : vector<8x1xf32>
    %23 = vector.broadcast %22 : vector<8x1xf32> to vector<8x8xf32>
    %24 = arith.mulf %20, %23 : vector<8x8xf32>
    %c0_19 = arith.constant 0 : index
    %c0_20 = arith.constant 0 : index
    %c0_21 = arith.constant 0 : index
    %c0_22 = arith.constant 0 : index
    %25 = vector.load %arg6[%c0_19, %c0_20, %c0_21, %c0_22] : memref<1x1x8x8xf32, #tpu.memory_space<vmem>>, vector<1x1x8x8xf32>
    %26 = vector.shape_cast %25 : vector<1x1x8x8xf32> to vector<8x8xf32>
    %27 = vector.shape_cast %24 : vector<8x8xf32> to vector<1x1x8x8xf32>
    tpu.vector_store %arg6[%c0_19, %c0_20, %c0_21, %c0_22], %27 {strides = array<i32>} : memref<1x1x8x8xf32, #tpu.memory_space<vmem>>, vector<1x1x8x8xf32>,
    return
  }
  func.func @transform_0(%arg0: i32, %arg1: i32) -> (i32, i32, i32, i32) {
    %c0_i32 = arith.constant 0 : i32
    %c0_i32_0 = arith.constant 0 : i32
    %c0_i32_1 = arith.constant 0 : i32
    return %arg0, %arg1, %c0_i32, %c0_i32_0 : i32, i32, i32, i32
  }
  func.func @transform_1(%arg0: i32, %arg1: i32) -> (i32, i32, i32, i32) {
    %c0_i32 = arith.constant 0 : i32
    %c0_i32_0 = arith.constant 0 : i32
    %c0_i32_1 = arith.constant 0 : i32
    return %arg0, %arg1, %c0_i32, %c0_i32_0 : i32, i32, i32, i32
  }
  func.func @transform_2(%arg0: i32, %arg1: i32) -> (i32, i32, i32, i32) {
    %c0_i32 = arith.constant 0 : i32
    %c0_i32_0 = arith.constant 0 : i32
    %c0_i32_1 = arith.constant 0 : i32
    return %arg0, %arg1, %c0_i32, %c0_i32_0 : i32, i32, i32, i32
  }
  func.func @transform_3(%arg0: i32, %arg1: i32) -> (i32, i32, i32) {
    %c0_i32 = arith.constant 0 : i32
    %c0_i32_0 = arith.constant 0 : i32
    %c0_i32_1 = arith.constant 0 : i32
    return %arg0, %c0_i32, %c0_i32_0 : i32, i32, i32
  }
  func.func @transform_4(%arg0: i32, %arg1: i32) -> (i32, i32, i32, i32) {
    %c0_i32 = arith.constant 0 : i32
    %c0_i32_0 = arith.constant 0 : i32
    %c0_i32_1 = arith.constant 0 : i32
    return %arg0, %arg1, %c0_i32, %c0_i32_0 : i32, i32, i32, i32
  }
}

module attributes {stable_mosaic.version = 11 : i64} {
  func.func @_matmul_residual_kernel(%arg0: i32, %arg1: i32, %arg2: memref<16x32xf32, #tpu.memory_space<vmem>>, %arg3: memref<32x32xf32, #tpu.memory_space<vmem>>, %arg4: memref<16x32xf32, #tpu.memory_space<vmem>>, %arg5: memref<16x32xf32, #tpu.memory_space<vmem>>) attributes {dimension_semantics = [#tpu.dimension_semantics<parallel>, #tpu.dimension_semantics<parallel>], iteration_bounds = array<i64: 1, 1>, scalar_prefetch = 0 : i64, scratch_operands = 0 : i64, tpu.core_type = #tpu.core_type<tc>, window_params = [{transform_indices = @transform_0, window_bounds = array<i64: 16, 32>}, {transform_indices = @transform_1, window_bounds = array<i64: 32, 32>}, {transform_indices = @transform_2, window_bounds = array<i64: 16, 32>}, {transform_indices = @transform_3, window_bounds = array<i64: 16, 32>}]} {
    %c0 = arith.constant 0 : index
    %c0_0 = arith.constant 0 : index
    %0 = vector.load %arg2[%c0, %c0_0] : memref<16x32xf32, #tpu.memory_space<vmem>>, vector<16x32xf32>
    %c0_1 = arith.constant 0 : index
    %c0_2 = arith.constant 0 : index
    %1 = vector.load %arg3[%c0_1, %c0_2] : memref<32x32xf32, #tpu.memory_space<vmem>>, vector<32x32xf32>
    %cst = arith.constant dense<0.000000e+00> : vector<16x32xf32>
    %2 = tpu.matmul %0, %1, %cst {dimension_numbers = #tpu.dot_dimension_numbers<[1], [0], [0], [1], [0, 0, 1, 1], [], []>} : vector<16x32xf32>, vector<32x32xf32>, vector<16x32xf32> -> vector<16x32xf32>
    %c0_3 = arith.constant 0 : index
    %c0_4 = arith.constant 0 : index
    %3 = vector.load %arg4[%c0_3, %c0_4] : memref<16x32xf32, #tpu.memory_space<vmem>>, vector<16x32xf32>
    %4 = arith.addf %3, %2 : vector<16x32xf32>
    %c0_5 = arith.constant 0 : index
    %c0_6 = arith.constant 0 : index
    %5 = vector.load %arg5[%c0_5, %c0_6] : memref<16x32xf32, #tpu.memory_space<vmem>>, vector<16x32xf32>
    tpu.vector_store %arg5[%c0_5, %c0_6], %4 {strides = array<i32>} : memref<16x32xf32, #tpu.memory_space<vmem>>, vector<16x32xf32>,
    return
  }
  func.func @transform_0(%arg0: i32, %arg1: i32) -> (i32, i32) {
    %c0_i32 = arith.constant 0 : i32
    %c0_i32_0 = arith.constant 0 : i32
    return %arg0, %c0_i32 : i32, i32
  }
  func.func @transform_1(%arg0: i32, %arg1: i32) -> (i32, i32) {
    %c0_i32 = arith.constant 0 : i32
    %c0_i32_0 = arith.constant 0 : i32
    return %c0_i32, %arg1 : i32, i32
  }
  func.func @transform_2(%arg0: i32, %arg1: i32) -> (i32, i32) {
    %c0_i32 = arith.constant 0 : i32
    return %arg0, %arg1 : i32, i32
  }
  func.func @transform_3(%arg0: i32, %arg1: i32) -> (i32, i32) {
    %c0_i32 = arith.constant 0 : i32
    return %arg0, %arg1 : i32, i32
  }
}

</mosaic_0001>

<llo_original>
// kernel: transformer_layer_forward.4
$region0: #{transformer_layer_forward.4}
  #allocation0 [shape = 'u32[]', space=smem, size = 0x4, offset = 0x4, fixed_abs, tag = 'smem constant byte address 0x4 - core index']
  #allocation1 [shape = 'u32[144,128]{1,0:T(1,128)}', space=vmem, size = 0x12000, scoped, tag = 'internal scratch']
  %s0 = inlined_call_operand.vmem [shape: f32[16,32], index: 0, kind: input, shape index: {}]
  %s1 = inlined_call_operand.vmem [shape: f32[1,32], index: 1, kind: input, shape index: {}]
  %s2 = inlined_call_operand.hbm [shape: f32[32,96], index: 2, kind: input, shape index: {}]
  %s3 = inlined_call_operand.vmem [shape: f32[16,96], index: 3, kind: output, shape index: {}]
  %s4 = sld [smem:[#allocation0]]
  $region26: #{transformer_layer_forward.4} parent=0
    _
  %s6 = ssub.s32 1, %s4
  %s7 = scalar_select 0, %s6, %s4
  $region1: #{transformer_layer_forward.4} parent=0
    #allocation2 [shape = 'u8[16384]{0}', space=vmem, size = 0x4000, scoped, tag = 'input window, operand 2, single buffered']
    #allocation3 [shape = 's32[1]{0}', space=sflag, size = 0x4, scoped, tag = 'scoped memory for transformer_layer_forward.4']
    %8 = vsyncpa [#allocation3], 0
    // Predicated region
    $region2: #{transformer_layer_forward.4} parent=1 // pred_check
      _
    $region3: #{transformer_layer_forward.4} parent=1 // pred_check_branch
      %10 = sbr.rel (0) target = $region5
    $region4: #{transformer_layer_forward.4} parent=1 // pred_region
      _
    $region5: #{transformer_layer_forward.4} parent=1 // pred_fallthru
      _
    // Predicated region
    $region6: #{transformer_layer_forward.4} parent=1 // pred_check
      _
    $region7: #{transformer_layer_forward.4} parent=1 // pred_check_branch
      %12 = sbr.rel (0) target = $region9
    $region8: #{transformer_layer_forward.4} parent=1 // pred_region
      _
    $region9: #{transformer_layer_forward.4} parent=1 // pred_fallthru
      _
    // Predicated region
    $region10: #{transformer_layer_forward.4} parent=1 // pred_check
      _
    $region11: #{transformer_layer_forward.4} parent=1 // pred_check_branch
      %14 = sbr.rel (0) target = $region13
    $region12: #{transformer_layer_forward.4} parent=1 // pred_region
      %s16 = ssub.s32 512, 512
      %17 = vsyncadd [#allocation3], %s16
      %s18 = sshll.u32 [#allocation2], 4
      %s19 = int_to_ptr.vmem [resolvable:$true] %s18
      %24 = dma.hbm_to_vmem [thread:$0]  %s2, 512, %s19, [#allocation3], 128, 128, 8
    $region13: #{transformer_layer_forward.4} parent=1 // pred_fallthru
      _
    // Predicated region
    $region14: #{transformer_layer_forward.4} parent=1 // pred_check
      _
    $region15: #{transformer_layer_forward.4} parent=1 // pred_check_branch
      %26 = sbr.rel (0) target = $region17
    $region16: #{transformer_layer_forward.4} parent=1 // pred_region
      %27 = dma.done [#allocation3], 512
    $region17: #{transformer_layer_forward.4} parent=1 // pred_fallthru
      _
    %v28 = vld [vmem:[%s0] sm:$0xff]
    %v29 = vld [vmem:[%s0 + $0x8] sm:$0xff]
    %vm30 = vcmask 261120
    %v31 = vsel %vm30, %v28, 0.0
    %32 = vadd.xlane.f32.xlu0 %v31
    %v33 = vpop.xlane.xlu0 %32
    %v34 = vsel %vm30, %v29, 0.0
    %35 = vadd.xlane.f32.xlu0 %v34
    %v36 = vpop.xlane.xlu0 %35
    %v37 = vmul.f32 %v28, %v28
    %v38 = vmul.f32 %v29, %v29
    %v39 = vsel %vm30, %v37, 0.0
    %40 = vadd.xlane.f32.xlu0 %v39
    %v41 = vpop.xlane.xlu0 %40
    %v42 = vsel %vm30, %v38, 0.0
    %43 = vadd.xlane.f32.xlu0 %v42
    %v44 = vpop.xlane.xlu0 %43
    %v45 = vmul.f32 %v33, 0.03125
    %v46 = vmul.f32 %v36, 0.03125
    %v47 = vmul.f32 %v41, 0.03125
    %v48 = vmul.f32 %v44, 0.03125
    %v49 = vmul.f32 %v45, %v45
    %v50 = vmul.f32 %v46, %v46
    %v51 = vsub.f32 %v47, %v49
    %v52 = vsub.f32 %v48, %v50
    %v53 = vmax.f32 %v51, 0.0
    %v54 = vmax.f32 %v52, 0.0
    %v55 = vadd.f32 %v53, 1e-05
    %v56 = vadd.f32 %v54, 1e-05
    %v57 = vrsqrt.pop %v55
    %v58 = vrsqrt.pop %v56
    %v59 = vsub.f32 %v28, %v45
    %v60 = vsub.f32 %v29, %v46
    %v61 = vmul.f32 %v59, %v57
    %v62 = vmul.f32 %v60, %v58
    %v63 = vld [vmem:[%s1] sm:$0x1]
    %v65 = vlaneseq
    %v66 = vshrl.u32 %v65, 7
    %v67 = vsub.s32 0, %v66
    %v68 = vrot.slane %v63, %v67
    %v70 = vmul.f32 %v61, %v68
    %v71 = vmul.f32 %v62, %v68
    %v72 = vld [vmem:[#allocation2] sm:$0xff]
    %v73 = vld [vmem:[#allocation2 + $0x8] sm:$0xff]
    %v74 = vld [vmem:[#allocation2 + $0x10] sm:$0xff]
    %v75 = vld [vmem:[#allocation2 + $0x18] sm:$0xff]
    %v77 = vsel %vm30, %v70, 0
    %v80 = vsel %vm30, %v71, 0
    %82 = vmatprep.subr.mxu0 0.0
    %83 = vmatpush1.msra.mxu0 %v72
    %84 = vmatprep.subr.mxu0 0.0
    %85 = vmatpush1.msra.mxu0 %v73
    %86 = vmatprep.subr.mxu0 0.0
    %87 = vmatpush1.msra.mxu0 %v74
    %88 = vmatprep.subr.mxu0 0.0
    %89 = vmatpush1.msra.mxu0 %v75
    %90 = vmatprep.subr.mxu0 0.0
    %91 = vmatpush1.msra.mxu0 0.0
    %92 = vmatprep.subr.mxu0 0.0
    %93 = vmatpush1.msra.mxu0 0.0
    %94 = vmatprep.subr.mxu0 0.0
    %95 = vmatpush1.msra.mxu0 0.0
    %96 = vmatprep.subr.mxu0 0.0
    %97 = vmatpush1.msra.mxu0 0.0
    %98 = vmatprep.subr.mxu0 0.0
    %99 = vmatpush1.msra.mxu0 0.0
    %100 = vmatprep.subr.mxu0 0.0
    %101 = vmatpush1.msra.mxu0 0.0
    %102 = vmatprep.subr.mxu0 0.0
    %103 = vmatpush1.msra.mxu0 0.0
    %104 = vmatprep.subr.mxu0 0.0
    %105 = vmatpush1.msra.mxu0 0.0
    %106 = vmatprep.subr.mxu0 0.0
    %107 = vmatpush1.msra.mxu0 0.0
    %108 = vmatprep.subr.mxu0 0.0
    %109 = vmatpush1.msra.mxu0 0.0
    %110 = vmatprep.subr.mxu0 0.0
    %111 = vmatpush1.msra.mxu0 0.0
    %112 = vmatprep.subr.mxu0 0.0
    %113 = vmatpush1.msra.mxu0 0.0
    %114 = vmatprep.subr.mxu0 0.0
    %115 = vmatpush1.msra.mxu0 0.0
    %116 = vmatprep.subr.mxu0 0.0
    %117 = vmatpush1.msra.mxu0 0.0
    %118 = vmatprep.subr.mxu0 0.0
    %119 = vmatpush1.msra.mxu0 0.0
    %120 = vmatprep.subr.mxu0 0.0
    %121 = vmatpush1.msra.mxu0 0.0
    %122 = vmatprep.subr.mxu0 0.0
    %123 = vmatpush1.msra.mxu0 0.0
    %124 = vmatprep.subr.mxu0 0.0
    %125 = vmatpush1.msra.mxu0 0.0
    %126 = vmatprep.subr.mxu0 0.0
    %127 = vmatpush1.msra.mxu0 0.0
    %128 = vmatprep.subr.mxu0 0.0
    %129 = vmatpush1.msra.mxu0 0.0
    %130 = vmatprep.subr.mxu0 0.0
    %131 = vmatpush1.msra.mxu0 0.0
    %132 = vmatprep.subr.mxu0 0.0
    %133 = vmatpush1.msra.mxu0 0.0
    %134 = vmatprep.subr.mxu0 0.0
    %135 = vmatpush1.msra.mxu0 0.0
    %136 = vmatprep.subr.mxu0 0.0
    %137 = vmatpush1.msra.mxu0 0.0
    %138 = vmatprep.subr.mxu0 0.0
    %139 = vmatpush1.msra.mxu0 0.0
    %140 = vmatprep.subr.mxu0 0.0
    %141 = vmatpush1.msra.mxu0 0.0
    %142 = vmatprep.subr.mxu0 0.0
    %143 = vmatpush1.msra.mxu0 0.0
    %144 = vmatprep.subr.mxu0 0.0
    %145 = vmatpush1.msra.mxu0 0.0
    %146 = vmatprep.mubr.f32.mxu0 0.0
    %147 = vmatmul.mubr.f32.gmra.mrb[0].mxu0 %v77
    %v148 = vpop.f32.mrb[0].mxu0
    %v149 = vadd.f32 0.0, %v148
    %v150 = vpop.f32.mrb[0].mxu0
    %151 = vmatprep.mubr.f32.mxu0 0.0
    %152 = vmatmul.mubr.f32.gmra.mrb[0].mxu0 %v80
    %v153 = vpop.f32.mrb[0].mxu0
    %v154 = vadd.f32 0.0, %v153
    %v155 = vpop.f32.mrb[0].mxu0
    %156 = vdwg.mxu0
    %vm157 = vcmask 785408
    %158 = vst.msk [vmem:[%s3] sm:$0xff] %vm157, %v149
    %159 = vst.msk [vmem:[%s3 + $0x8] sm:$0xff] %vm157, %v154
    // Predicated region
    $region18: #{transformer_layer_forward.4} parent=1 // pred_check
      _
    $region19: #{transformer_layer_forward.4} parent=1 // pred_check_branch
      %161 = sbr.rel (0) target = $region21
    $region20: #{transformer_layer_forward.4} parent=1 // pred_region
      _
    $region21: #{transformer_layer_forward.4} parent=1 // pred_fallthru
      _
    // Predicated region
    $region22: #{transformer_layer_forward.4} parent=1 // pred_check
      _
    $region23: #{transformer_layer_forward.4} parent=1 // pred_check_branch
      %163 = sbr.rel (0) target = $region25
    $region24: #{transformer_layer_forward.4} parent=1 // pred_region
      _
    $region25: #{transformer_layer_forward.4} parent=1 // pred_fallthru
      _
    %164 = vsyncpa [#allocation3], 1

// kernel: transformer_layer_forward.7
$region0: #{transformer_layer_forward.7}
  #allocation0 [shape = 'u32[]', space=smem, size = 0x4, offset = 0x4, fixed_abs, tag = 'smem constant byte address 0x4 - core index']
  #allocation1 [shape = 'u32[144,128]{1,0:T(1,128)}', space=vmem, size = 0x12000, scoped, tag = 'internal scratch']
  %s0 = inlined_call_operand.vmem [shape: f32[16,32], index: 0, kind: input, shape index: {}]
  %s1 = inlined_call_operand.vmem [shape: f32[1,32], index: 1, kind: input, shape index: {}]
  %s2 = inlined_call_operand.vmem [shape: f32[32,32], index: 2, kind: input, shape index: {}]
  %s3 = inlined_call_operand.vmem [shape: f32[32,32], index: 3, kind: input, shape index: {}]
  %s4 = inlined_call_operand.hbm [shape: f32[16,32], index: 4, kind: output, shape index: {}]
  %s5 = sld [smem:[#allocation0]]
  $region26: #{transformer_layer_forward.7} parent=0
    _
  %s7 = ssub.s32 1, %s5
  %s8 = scalar_select 0, %s7, %s5
  $region1: #{transformer_layer_forward.7} parent=0
    #allocation2 [shape = 'u8[8192]{0}', space=vmem, size = 0x2000, scoped, tag = 'output window, operand 0, single buffered']
    #allocation3 [shape = 's32[1]{0}', space=sflag, size = 0x4, scoped, tag = 'scoped memory for transformer_layer_forward.7']
    %9 = vsyncpa [#allocation3], 0
    // Predicated region
    $region2: #{transformer_layer_forward.7} parent=1 // pred_check
      _
    $region3: #{transformer_layer_forward.7} parent=1 // pred_check_branch
      %11 = sbr.rel (0) target = $region5
    $region4: #{transformer_layer_forward.7} parent=1 // pred_region
      _
    $region5: #{transformer_layer_forward.7} parent=1 // pred_fallthru
      _
    // Predicated region
    $region6: #{transformer_layer_forward.7} parent=1 // pred_check
      _
    $region7: #{transformer_layer_forward.7} parent=1 // pred_check_branch
      %13 = sbr.rel (0) target = $region9
    $region8: #{transformer_layer_forward.7} parent=1 // pred_region
      _
    $region9: #{transformer_layer_forward.7} parent=1 // pred_fallthru
      _
    // Predicated region
    $region10: #{transformer_layer_forward.7} parent=1 // pred_check
      _
    $region11: #{transformer_layer_forward.7} parent=1 // pred_check_branch
      %15 = sbr.rel (0) target = $region13
    $region12: #{transformer_layer_forward.7} parent=1 // pred_region
      _
    $region13: #{transformer_layer_forward.7} parent=1 // pred_fallthru
      _
    // Predicated region
    $region14: #{transformer_layer_forward.7} parent=1 // pred_check
      _
    $region15: #{transformer_layer_forward.7} parent=1 // pred_check_branch
      %17 = sbr.rel (0) target = $region17
    $region16: #{transformer_layer_forward.7} parent=1 // pred_region
      _
    $region17: #{transformer_layer_forward.7} parent=1 // pred_fallthru
      _
    %v18 = vld [vmem:[%s0] sm:$0xff]
    %v19 = vld [vmem:[%s0 + $0x8] sm:$0xff]
    %vm20 = vcmask 261120
    %v21 = vsel %vm20, %v18, 0.0
    %22 = vadd.xlane.f32.xlu0 %v21
    %v23 = vpop.xlane.xlu0 %22
    %v24 = vsel %vm20, %v19, 0.0
    %25 = vadd.xlane.f32.xlu0 %v24
    %v26 = vpop.xlane.xlu0 %25
    %v27 = vmul.f32 %v18, %v18
    %v28 = vmul.f32 %v19, %v19
    %v29 = vsel %vm20, %v27, 0.0
    %30 = vadd.xlane.f32.xlu0 %v29
    %v31 = vpop.xlane.xlu0 %30
    %v32 = vsel %vm20, %v28, 0.0
    %33 = vadd.xlane.f32.xlu0 %v32
    %v34 = vpop.xlane.xlu0 %33
    %v35 = vmul.f32 %v23, 0.03125
    %v36 = vmul.f32 %v26, 0.03125
    %v37 = vmul.f32 %v31, 0.03125
    %v38 = vmul.f32 %v34, 0.03125
    %v39 = vmul.f32 %v35, %v35
    %v40 = vmul.f32 %v36, %v36
    %v41 = vsub.f32 %v37, %v39
    %v42 = vsub.f32 %v38, %v40
    %v43 = vmax.f32 %v41, 0.0
    %v44 = vmax.f32 %v42, 0.0
    %v45 = vsub.f32 %v18, %v35
    %v46 = vsub.f32 %v19, %v36
    %v47 = vadd.f32 %v43, 1e-05
    %v48 = vadd.f32 %v44, 1e-05
    %v49 = vrsqrt.pop %v47
    %v50 = vrsqrt.pop %v48
    %v51 = vmul.f32 %v45, %v49
    %v52 = vmul.f32 %v46, %v50
    %v53 = vld [vmem:[%s1] sm:$0x1]
    %v55 = vlaneseq
    %v56 = vshrl.u32 %v55, 7
    %v57 = vsub.s32 0, %v56
    %v58 = vrot.slane %v53, %v57
    %v60 = vmul.f32 %v51, %v58
    %v61 = vmul.f32 %v52, %v58
    %v62 = vld [vmem:[%s2] sm:$0xff]
    %v63 = vld [vmem:[%s2 + $0x8] sm:$0xff]
    %v64 = vld [vmem:[%s2 + $0x10] sm:$0xff]
    %v65 = vld [vmem:[%s2 + $0x18] sm:$0xff]
    %v67 = vsel %vm20, %v60, 0
    %v70 = vsel %vm20, %v61, 0
    %72 = vmatprep.subr.mxu0 0.0
    %73 = vmatpush1.msra.mxu0 %v62
    %74 = vmatprep.subr.mxu0 0.0
    %75 = vmatpush1.msra.mxu0 %v63
    %76 = vmatprep.subr.mxu0 0.0
    %77 = vmatpush1.msra.mxu0 %v64
    %78 = vmatprep.subr.mxu0 0.0
    %79 = vmatpush1.msra.mxu0 %v65
    %80 = vmatprep.subr.mxu0 0.0
    %81 = vmatpush1.msra.mxu0 0.0
    %82 = vmatprep.subr.mxu0 0.0
    %83 = vmatpush1.msra.mxu0 0.0
    %84 = vmatprep.subr.mxu0 0.0
    %85 = vmatpush1.msra.mxu0 0.0
    %86 = vmatprep.subr.mxu0 0.0
    %87 = vmatpush1.msra.mxu0 0.0
    %88 = vmatprep.subr.mxu0 0.0
    %89 = vmatpush1.msra.mxu0 0.0
    %90 = vmatprep.subr.mxu0 0.0
    %91 = vmatpush1.msra.mxu0 0.0
    %92 = vmatprep.subr.mxu0 0.0
    %93 = vmatpush1.msra.mxu0 0.0
    %94 = vmatprep.subr.mxu0 0.0
    %95 = vmatpush1.msra.mxu0 0.0
    %96 = vmatprep.subr.mxu0 0.0
    %97 = vmatpush1.msra.mxu0 0.0
    %98 = vmatprep.subr.mxu0 0.0
    %99 = vmatpush1.msra.mxu0 0.0
    %100 = vmatprep.subr.mxu0 0.0
    %101 = vmatpush1.msra.mxu0 0.0
    %102 = vmatprep.subr.mxu0 0.0
    %103 = vmatpush1.msra.mxu0 0.0
    %104 = vmatprep.subr.mxu0 0.0
    %105 = vmatpush1.msra.mxu0 0.0
    %106 = vmatprep.subr.mxu0 0.0
    %107 = vmatpush1.msra.mxu0 0.0
    %108 = vmatprep.subr.mxu0 0.0
    %109 = vmatpush1.msra.mxu0 0.0
    %110 = vmatprep.subr.mxu0 0.0
    %111 = vmatpush1.msra.mxu0 0.0
    %112 = vmatprep.subr.mxu0 0.0
    %113 = vmatpush1.msra.mxu0 0.0
    %114 = vmatprep.subr.mxu0 0.0
    %115 = vmatpush1.msra.mxu0 0.0
    %116 = vmatprep.subr.mxu0 0.0
    %117 = vmatpush1.msra.mxu0 0.0
    %118 = vmatprep.subr.mxu0 0.0
    %119 = vmatpush1.msra.mxu0 0.0
    %120 = vmatprep.subr.mxu0 0.0
    %121 = vmatpush1.msra.mxu0 0.0
    %122 = vmatprep.subr.mxu0 0.0
    %123 = vmatpush1.msra.mxu0 0.0
    %124 = vmatprep.subr.mxu0 0.0
    %125 = vmatpush1.msra.mxu0 0.0
    %126 = vmatprep.subr.mxu0 0.0
    %127 = vmatpush1.msra.mxu0 0.0
    %128 = vmatprep.subr.mxu0 0.0
    %129 = vmatpush1.msra.mxu0 0.0
    %130 = vmatprep.subr.mxu0 0.0
    %131 = vmatpush1.msra.mxu0 0.0
    %132 = vmatprep.subr.mxu0 0.0
    %133 = vmatpush1.msra.mxu0 0.0
    %134 = vmatprep.subr.mxu0 0.0
    %135 = vmatpush1.msra.mxu0 0.0
    %136 = vmatprep.mubr.f32.mxu0 0.0
    %137 = vmatmul.mubr.f32.gmra.mrb[0].mxu0 %v67
    %v138 = vpop.f32.mrb[0].mxu0
    %v139 = vadd.f32 0.0, %v138
    %v140 = vpop.f32.mrb[0].mxu0
    %141 = vmatprep.mubr.f32.mxu0 0.0
    %142 = vmatmul.mubr.f32.gmra.mrb[0].mxu0 %v70
    %v143 = vpop.f32.mrb[0].mxu0
    %v144 = vadd.f32 0.0, %v143
    %v145 = vpop.f32.mrb[0].mxu0
    %146 = vdwg.mxu0
    %v147 = vmul.f32 %v139, 0.70710677
    %v148 = vmul.f32 %v144, 0.70710677
    %v149 = vand.u32 2147483647, %v147
    %v150 = vand.u32 2147483647, %v148
    %v151 = vmul.f32 %v149, 0.3275911
    %v152 = vmul.f32 %v150, 0.3275911
    %v153 = vadd.f32 %v151, 1.0
    %v154 = vadd.f32 %v152, 1.0
    %v155 = vrcp.pop %v153
    %v156 = vmul.f32 1.0, %v155
    %v157 = vrcp.pop %v154
    %v158 = vmul.f32 1.0, %v157
    %v159 = vmul.f32 %v156, 1.0614054
    %v160 = vmul.f32 %v158, 1.0614054
    %v161 = vadd.f32 %v159, -1.4531521
    %v162 = vadd.f32 %v160, -1.4531521
    %v163 = vmul.f32 %v156, %v161
    %v164 = vmul.f32 %v158, %v162
    %v165 = vadd.f32 %v163, 1.4214138
    %v166 = vadd.f32 %v164, 1.4214138
    %v167 = vmul.f32 %v156, %v165
    %v168 = vmul.f32 %v158, %v166
    %v169 = vadd.f32 %v167, -0.28449672
    %v170 = vadd.f32 %v168, -0.28449672
    %v171 = vmul.f32 %v156, %v169
    %v172 = vmul.f32 %v158, %v170
    %v173 = vadd.f32 %v171, 0.2548296
    %v174 = vadd.f32 %v172, 0.2548296
    %v175 = vmul.f32 %v156, %v173
    %v176 = vmul.f32 %v158, %v174
    %v177 = vsub.f32 0.0, %v149
    %v178 = vsub.f32 0.0, %v150
    %v179 = vmul.f32 %v177, %v149
    %v180 = vmul.f32 %v178, %v150
    %v181 = vmul.f32 %v179, 1.442695
    %v182 = vpow.pop %v181
    %v183 = vmul.f32 %v180, 1.442695
    %v184 = vpow.pop %v183
    %v185 = vmul.f32 %v175, %v182
    %v186 = vmul.f32 %v176, %v184
    %v187 = vsub.f32 1.0, %v185
    %v188 = vsub.f32 1.0, %v186
    %vm189 = vcmp.ge.f32.partialorder %v147, 0.0
    %vm190 = vcmp.ge.f32.partialorder %v148, 0.0
    %v191 = vsub.f32 0.0, %v187
    %v192 = vsub.f32 0.0, %v188
    %v193 = vsel %vm189, %v187, %v191
    %v194 = vsel %vm190, %v188, %v192
    %v195 = vmul.f32 %v139, 0.5
    %v196 = vmul.f32 %v144, 0.5
    %v197 = vadd.f32 %v193, 1.0
    %v198 = vadd.f32 %v194, 1.0
    %v199 = vmul.f32 %v195, %v197
    %v200 = vmul.f32 %v196, %v198
    %v201 = vld [vmem:[%s3] sm:$0xff]
    %v202 = vld [vmem:[%s3 + $0x8] sm:$0xff]
    %v203 = vld [vmem:[%s3 + $0x10] sm:$0xff]
    %v204 = vld [vmem:[%s3 + $0x18] sm:$0xff]
    %v206 = vsel %vm20, %v199, 0
    %v209 = vsel %vm20, %v200, 0
    %211 = vmatprep.subr.mxu0 0.0
    %212 = vmatpush1.msra.mxu0 %v201
    %213 = vmatprep.subr.mxu0 0.0
    %214 = vmatpush1.msra.mxu0 %v202
    %215 = vmatprep.subr.mxu0 0.0
    %216 = vmatpush1.msra.mxu0 %v203
    %217 = vmatprep.subr.mxu0 0.0
    %218 = vmatpush1.msra.mxu0 %v204
    %219 = vmatprep.subr.mxu0 0.0
    %220 = vmatpush1.msra.mxu0 0.0
    %221 = vmatprep.subr.mxu0 0.0
    %222 = vmatpush1.msra.mxu0 0.0
    %223 = vmatprep.subr.mxu0 0.0
    %224 = vmatpush1.msra.mxu0 0.0
    %225 = vmatprep.subr.mxu0 0.0
    %226 = vmatpush1.msra.mxu0 0.0
    %227 = vmatprep.subr.mxu0 0.0
    %228 = vmatpush1.msra.mxu0 0.0
    %229 = vmatprep.subr.mxu0 0.0
    %230 = vmatpush1.msra.mxu0 0.0
    %231 = vmatprep.subr.mxu0 0.0
    %232 = vmatpush1.msra.mxu0 0.0
    %233 = vmatprep.subr.mxu0 0.0
    %234 = vmatpush1.msra.mxu0 0.0
    %235 = vmatprep.subr.mxu0 0.0
    %236 = vmatpush1.msra.mxu0 0.0
    %237 = vmatprep.subr.mxu0 0.0
    %238 = vmatpush1.msra.mxu0 0.0
    %239 = vmatprep.subr.mxu0 0.0
    %240 = vmatpush1.msra.mxu0 0.0
    %241 = vmatprep.subr.mxu0 0.0
    %242 = vmatpush1.msra.mxu0 0.0
    %243 = vmatprep.subr.mxu0 0.0
    %244 = vmatpush1.msra.mxu0 0.0
    %245 = vmatprep.subr.mxu0 0.0
    %246 = vmatpush1.msra.mxu0 0.0
    %247 = vmatprep.subr.mxu0 0.0
    %248 = vmatpush1.msra.mxu0 0.0
    %249 = vmatprep.subr.mxu0 0.0
    %250 = vmatpush1.msra.mxu0 0.0
    %251 = vmatprep.subr.mxu0 0.0
    %252 = vmatpush1.msra.mxu0 0.0
    %253 = vmatprep.subr.mxu0 0.0
    %254 = vmatpush1.msra.mxu0 0.0
    %255 = vmatprep.subr.mxu0 0.0
    %256 = vmatpush1.msra.mxu0 0.0
    %257 = vmatprep.subr.mxu0 0.0
    %258 = vmatpush1.msra.mxu0 0.0
    %259 = vmatprep.subr.mxu0 0.0
    %260 = vmatpush1.msra.mxu0 0.0
    %261 = vmatprep.subr.mxu0 0.0
    %262 = vmatpush1.msra.mxu0 0.0
    %263 = vmatprep.subr.mxu0 0.0
    %264 = vmatpush1.msra.mxu0 0.0
    %265 = vmatprep.subr.mxu0 0.0
    %266 = vmatpush1.msra.mxu0 0.0
    %267 = vmatprep.subr.mxu0 0.0
    %268 = vmatpush1.msra.mxu0 0.0
    %269 = vmatprep.subr.mxu0 0.0
    %270 = vmatpush1.msra.mxu0 0.0
    %271 = vmatprep.subr.mxu0 0.0
    %272 = vmatpush1.msra.mxu0 0.0
    %273 = vmatprep.subr.mxu0 0.0
    %274 = vmatpush1.msra.mxu0 0.0
    %275 = vmatprep.mubr.f32.mxu0 0.0
    %276 = vmatmul.mubr.f32.gmra.mrb[0].mxu0 %v206
    %v277 = vpop.f32.mrb[0].mxu0
    %v278 = vadd.f32 0.0, %v277
    %v279 = vpop.f32.mrb[0].mxu0
    %280 = vmatprep.mubr.f32.mxu0 0.0
    %281 = vmatmul.mubr.f32.gmra.mrb[0].mxu0 %v209
    %v282 = vpop.f32.mrb[0].mxu0
    %v283 = vadd.f32 0.0, %v282
    %v284 = vpop.f32.mrb[0].mxu0
    %285 = vdwg.mxu0
    %v286 = vadd.f32 %v18, %v278
    %v287 = vadd.f32 %v19, %v283
    %288 = vst.msk [vmem:[#allocation2] sm:$0xff] %vm20, %v286
    %289 = vst.msk [vmem:[#allocation2 + $0x8] sm:$0xff] %vm20, %v287
    // Predicated region
    $region18: #{transformer_layer_forward.7} parent=1 // pred_check
      _
    $region19: #{transformer_layer_forward.7} parent=1 // pred_check_branch
      %291 = sbr.rel (0) target = $region21
    $region20: #{transformer_layer_forward.7} parent=1 // pred_region
      %s293 = ssub.s32 256, 256
      %294 = vsyncadd [#allocation3], %s293
      %s295 = sshll.u32 [#allocation2], 4
      %s296 = int_to_ptr.vmem [resolvable:$true] %s295
      %301 = dma.vmem_to_hbm [thread:$0]  %s296, 256, %s4, [#allocation3], 128, 128, 8
    $region21: #{transformer_layer_forward.7} parent=1 // pred_fallthru
      _
    // Predicated region
    $region22: #{transformer_layer_forward.7} parent=1 // pred_check
      _
    $region23: #{transformer_layer_forward.7} parent=1 // pred_check_branch
      %303 = sbr.rel (0) target = $region25
    $region24: #{transformer_layer_forward.7} parent=1 // pred_region
      %304 = dma.done [#allocation3], 256
    $region25: #{transformer_layer_forward.7} parent=1 // pred_fallthru
      _
    %305 = vsyncpa [#allocation3], 1

// kernel: transformer_layer_forward.6
$region0: #{transformer_layer_forward.6}
  #allocation0 [shape = 'u32[]', space=smem, size = 0x4, offset = 0x4, fixed_abs, tag = 'smem constant byte address 0x4 - core index']
  #allocation1 [shape = 'u32[144,128]{1,0:T(1,128)}', space=vmem, size = 0x12000, scoped, tag = 'internal scratch']
  %s0 = inlined_call_operand.vmem [shape: f32[16,32], index: 0, kind: input, shape index: {}]
  %s1 = inlined_call_operand.vmem [shape: f32[32,32], index: 1, kind: input, shape index: {}]
  %s2 = inlined_call_operand.vmem [shape: f32[16,32], index: 2, kind: input, shape index: {}]
  %s3 = inlined_call_operand.vmem [shape: f32[16,32], index: 3, kind: output, shape index: {}]
  %s4 = sld [smem:[#allocation0]]
  $region22: #{transformer_layer_forward.6} parent=0
    _
  %s6 = ssub.s32 1, %s4
  %s7 = scalar_select 0, %s6, %s4
  // Predicated region
  $region2: #{transformer_layer_forward.6} parent=0 // pred_check
    _
  $region3: #{transformer_layer_forward.6} parent=0 // pred_check_branch
    %9 = sbr.rel (0) target = $region5
  $region4: #{transformer_layer_forward.6} parent=0 // pred_region
    _
  $region5: #{transformer_layer_forward.6} parent=0 // pred_fallthru
    _
  // Predicated region
  $region6: #{transformer_layer_forward.6} parent=0 // pred_check
    _
  $region7: #{transformer_layer_forward.6} parent=0 // pred_check_branch
    %11 = sbr.rel (0) target = $region9
  $region8: #{transformer_layer_forward.6} parent=0 // pred_region
    _
  $region9: #{transformer_layer_forward.6} parent=0 // pred_fallthru
    _
  // Predicated region
  $region10: #{transformer_layer_forward.6} parent=0 // pred_check
    _
  $region11: #{transformer_layer_forward.6} parent=0 // pred_check_branch
    %13 = sbr.rel (0) target = $region13
  $region12: #{transformer_layer_forward.6} parent=0 // pred_region
    _
  $region13: #{transformer_layer_forward.6} parent=0 // pred_fallthru
    _
  %v14 = vld [vmem:[%s0] sm:$0xff]
  %v15 = vld [vmem:[%s0 + $0x8] sm:$0xff]
  %v16 = vld [vmem:[%s1] sm:$0xff]
  %v17 = vld [vmem:[%s1 + $0x8] sm:$0xff]
  %v18 = vld [vmem:[%s1 + $0x10] sm:$0xff]
  %v19 = vld [vmem:[%s1 + $0x18] sm:$0xff]
  %vm20 = vcmask 261120
  %v22 = vsel %vm20, %v14, 0
  %v25 = vsel %vm20, %v15, 0
  %27 = vmatprep.subr.mxu0 0.0
  %28 = vmatpush1.msra.mxu0 %v16
  %29 = vmatprep.subr.mxu0 0.0
  %30 = vmatpush1.msra.mxu0 %v17
  %31 = vmatprep.subr.mxu0 0.0
  %32 = vmatpush1.msra.mxu0 %v18
  %33 = vmatprep.subr.mxu0 0.0
  %34 = vmatpush1.msra.mxu0 %v19
  %35 = vmatprep.subr.mxu0 0.0
  %36 = vmatpush1.msra.mxu0 0.0
  %37 = vmatprep.subr.mxu0 0.0
  %38 = vmatpush1.msra.mxu0 0.0
  %39 = vmatprep.subr.mxu0 0.0
  %40 = vmatpush1.msra.mxu0 0.0
  %41 = vmatprep.subr.mxu0 0.0
  %42 = vmatpush1.msra.mxu0 0.0
  %43 = vmatprep.subr.mxu0 0.0
  %44 = vmatpush1.msra.mxu0 0.0
  %45 = vmatprep.subr.mxu0 0.0
  %46 = vmatpush1.msra.mxu0 0.0
  %47 = vmatprep.subr.mxu0 0.0
  %48 = vmatpush1.msra.mxu0 0.0
  %49 = vmatprep.subr.mxu0 0.0
  %50 = vmatpush1.msra.mxu0 0.0
  %51 = vmatprep.subr.mxu0 0.0
  %52 = vmatpush1.msra.mxu0 0.0
  %53 = vmatprep.subr.mxu0 0.0
  %54 = vmatpush1.msra.mxu0 0.0
  %55 = vmatprep.subr.mxu0 0.0
  %56 = vmatpush1.msra.mxu0 0.0
  %57 = vmatprep.subr.mxu0 0.0
  %58 = vmatpush1.msra.mxu0 0.0
  %59 = vmatprep.subr.mxu0 0.0
  %60 = vmatpush1.msra.mxu0 0.0
  %61 = vmatprep.subr.mxu0 0.0
  %62 = vmatpush1.msra.mxu0 0.0
  %63 = vmatprep.subr.mxu0 0.0
  %64 = vmatpush1.msra.mxu0 0.0
  %65 = vmatprep.subr.mxu0 0.0
  %66 = vmatpush1.msra.mxu0 0.0
  %67 = vmatprep.subr.mxu0 0.0
  %68 = vmatpush1.msra.mxu0 0.0
  %69 = vmatprep.subr.mxu0 0.0
  %70 = vmatpush1.msra.mxu0 0.0
  %71 = vmatprep.subr.mxu0 0.0
  %72 = vmatpush1.msra.mxu0 0.0
  %73 = vmatprep.subr.mxu0 0.0
  %74 = vmatpush1.msra.mxu0 0.0
  %75 = vmatprep.subr.mxu0 0.0
  %76 = vmatpush1.msra.mxu0 0.0
  %77 = vmatprep.subr.mxu0 0.0
  %78 = vmatpush1.msra.mxu0 0.0
  %79 = vmatprep.subr.mxu0 0.0
  %80 = vmatpush1.msra.mxu0 0.0
  %81 = vmatprep.subr.mxu0 0.0
  %82 = vmatpush1.msra.mxu0 0.0
  %83 = vmatprep.subr.mxu0 0.0
  %84 = vmatpush1.msra.mxu0 0.0
  %85 = vmatprep.subr.mxu0 0.0
  %86 = vmatpush1.msra.mxu0 0.0
  %87 = vmatprep.subr.mxu0 0.0
  %88 = vmatpush1.msra.mxu0 0.0
  %89 = vmatprep.subr.mxu0 0.0
  %90 = vmatpush1.msra.mxu0 0.0
  %91 = vmatprep.mubr.f32.mxu0 0.0
  %92 = vmatmul.mubr.f32.gmra.mrb[0].mxu0 %v22
  %v93 = vpop.f32.mrb[0].mxu0
  %v94 = vadd.f32 0.0, %v93
  %v95 = vpop.f32.mrb[0].mxu0
  %96 = vmatprep.mubr.f32.mxu0 0.0
  %97 = vmatmul.mubr.f32.gmra.mrb[0].mxu0 %v25
  %v98 = vpop.f32.mrb[0].mxu0
  %v99 = vadd.f32 0.0, %v98
  %v100 = vpop.f32.mrb[0].mxu0
  %101 = vdwg.mxu0
  %v102 = vld [vmem:[%s2] sm:$0xff]
  %v103 = vld [vmem:[%s2 + $0x8] sm:$0xff]
  %v104 = vadd.f32 %v102, %v94
  %v105 = vadd.f32 %v103, %v99
  %106 = vst.msk [vmem:[%s3] sm:$0xff] %vm20, %v104
  %107 = vst.msk [vmem:[%s3 + $0x8] sm:$0xff] %vm20, %v105
  // Predicated region
  $region14: #{transformer_layer_forward.6} parent=0 // pred_check
    _
  $region15: #{transformer_layer_forward.6} parent=0 // pred_check_branch
    %109 = sbr.rel (0) target = $region17
  $region16: #{transformer_layer_forward.6} parent=0 // pred_region
    _
  $region17: #{transformer_layer_forward.6} parent=0 // pred_fallthru
    _
  // Predicated region
  $region18: #{transformer_layer_forward.6} parent=0 // pred_check
    _
  $region19: #{transformer_layer_forward.6} parent=0 // pred_check_branch
    %111 = sbr.rel (0) target = $region21
  $region20: #{transformer_layer_forward.6} parent=0 // pred_region
    _
  $region21: #{transformer_layer_forward.6} parent=0 // pred_fallthru
    _

// kernel: transformer_layer_forward.5
$region0: #{transformer_layer_forward.5}
  #allocation0 [shape = 'u32[]', space=smem, size = 0x4, offset = 0x4, fixed_abs, tag = 'smem constant byte address 0x4 - core index']
  #allocation1 [shape = 'u32[144,128]{1,0:T(1,128)}', space=vmem, size = 0x12000, scoped, tag = 'internal scratch']
  %s0 = inlined_call_operand.vmem [shape: f32[2,4,8,8], index: 0, kind: input, shape index: {}]
  %s1 = inlined_call_operand.vmem [shape: f32[2,4,8,8], index: 1, kind: input, shape index: {}]
  %s2 = inlined_call_operand.vmem [shape: f32[2,4,8,8], index: 2, kind: input, shape index: {}]
  %s3 = inlined_call_operand.vmem [shape: f32[2,1,8], index: 3, kind: input, shape index: {}]
  %s4 = inlined_call_operand.vmem [shape: f32[2,4,8,8], index: 4, kind: output, shape index: {}]
  %s5 = sld [smem:[#allocation0]]
  $region49: #{transformer_layer_forward.5} parent=0
    _
  %s7 = ssub.s32 1, %s5
  %s8 = scalar_select 0, %s7, %s5
  loop: start=0, step=1, limit=10
  $region2: #{transformer_layer_forward.5} parent=0 // loop_pre_header
    _
  $region3: #{transformer_layer_forward.5} parent=0 // loop_header
    %s10 = sphi 0, %s14
    %p11 = scmp.ge.s32.totalorder %s10, 10
    %s17 = sphi 0, %s29
    %s18 = sphi 0, %s25
    %s19 = sphi 0, %s17
    %s20 = sphi 0, %s18
    %s21 = sphi 0, %s19
    %s22 = sphi 0, %s20
    %s34 = sphi 0, %s36
    %s37 = sphi 0, %s34
    %s38 = sphi 0, %s37
    %s54 = sphi 0, %s38
    %s62 = sphi 0, %s64
    %s65 = sphi 0, %s62
    %s66 = sphi 0, %s65
    %s82 = sphi 0, %s66
    %s90 = sphi 0, %s92
    %s93 = sphi 0, %s90
    %s94 = sphi 0, %s93
    %s110 = sphi 0, %s94
    %s116 = sphi 0, %s118
    %s119 = sphi 0, %s116
    %s120 = sphi 0, %s119
    %s136 = sphi 0, %s120
    %s144 = sphi 0, %s146
    %s147 = sphi 0, %s144
    %s148 = sphi 0, %s147
    %s164 = sphi 0, %s148
  $region4: #{transformer_layer_forward.5} parent=0 // loop_header_branch
    %13 = sbr.rel (%p11) target = $region8
  $region5: #{transformer_layer_forward.5} parent=0 // loop_body
    %s15 = ssub.s32 %s10, 1
    %s16 = ssub.s32 %s10, 2
    %s23 = sadd.s32 1, %s18
    %p24 = scmp.ge.s32.totalorder %s23, 4
    %s25 = scalar_select %p24, 0, %s23
    %s26 = sadd.s32 1, %s17
    %s27 = scalar_select %p24, %s26, %s17
    %p28 = scmp.ge.s32.totalorder %s27, 2
    %s29 = scalar_select %p28, 0, %s27
    %s30 = ssub.s32 %s17, %s29
    %s31 = ssub.s32 %s18, %s25
    %s32 = sor.u32 %s30, %s31
    %p33 = scmp.eq.s32.totalorder %s32, 0
    %s35 = sadd.s32 %s34, 1
    %s36 = scalar_select %p33, %s34, %s35
    %p39 = pneg %p33
    %p40 = scmp.eq.s32.totalorder %s10, 7
    %p41 = por %p39, %p40
    %p42 = scmp.ne.s32.totalorder %s34, %s37
    %p43 = scmp.eq.s32.totalorder %s10, 0
    %p44 = por %p42, %p43
    %p45 = scmp.ne.s32.totalorder %s34, %s37
    %p46 = scmp.eq.s32.totalorder %s15, 7
    %p47 = por %p45, %p46
    %p48 = scmp.ne.s32.totalorder %s37, %s38
    %p49 = scmp.eq.s32.totalorder %s15, 0
    %p50 = por %p48, %p49
    %p51 = scmp.ne.s32.totalorder %s37, %s38
    %p52 = scmp.eq.s32.totalorder %s16, 7
    %p53 = por %p51, %p52
    %p55 = scmp.ne.s32.totalorder %s38, %s54
    %p56 = scmp.eq.s32.totalorder %s16, 0
    %p57 = por %p55, %p56
    %s58 = ssub.s32 %s17, %s29
    %s59 = ssub.s32 %s18, %s25
    %s60 = sor.u32 %s58, %s59
    %p61 = scmp.eq.s32.totalorder %s60, 0
    %s63 = sadd.s32 %s62, 1
    %s64 = scalar_select %p61, %s62, %s63
    %p67 = pneg %p61
    %p68 = scmp.eq.s32.totalorder %s10, 7
    %p69 = por %p67, %p68
    %p70 = scmp.ne.s32.totalorder %s62, %s65
    %p71 = scmp.eq.s32.totalorder %s10, 0
    %p72 = por %p70, %p71
    %p73 = scmp.ne.s32.totalorder %s62, %s65
    %p74 = scmp.eq.s32.totalorder %s15, 7
    %p75 = por %p73, %p74
    %p76 = scmp.ne.s32.totalorder %s65, %s66
    %p77 = scmp.eq.s32.totalorder %s15, 0
    %p78 = por %p76, %p77
    %p79 = scmp.ne.s32.totalorder %s65, %s66
    %p80 = scmp.eq.s32.totalorder %s16, 7
    %p81 = por %p79, %p80
    %p83 = scmp.ne.s32.totalorder %s66, %s82
    %p84 = scmp.eq.s32.totalorder %s16, 0
    %p85 = por %p83, %p84
    %s86 = ssub.s32 %s17, %s29
    %s87 = ssub.s32 %s18, %s25
    %s88 = sor.u32 %s86, %s87
    %p89 = scmp.eq.s32.totalorder %s88, 0
    %s91 = sadd.s32 %s90, 1
    %s92 = scalar_select %p89, %s90, %s91
    %p95 = pneg %p89
    %p96 = scmp.eq.s32.totalorder %s10, 7
    %p97 = por %p95, %p96
    %p98 = scmp.ne.s32.totalorder %s90, %s93
    %p99 = scmp.eq.s32.totalorder %s10, 0
    %p100 = por %p98, %p99
    %p101 = scmp.ne.s32.totalorder %s90, %s93
    %p102 = scmp.eq.s32.totalorder %s15, 7
    %p103 = por %p101, %p102
    %p104 = scmp.ne.s32.totalorder %s93, %s94
    %p105 = scmp.eq.s32.totalorder %s15, 0
    %p106 = por %p104, %p105
    %p107 = scmp.ne.s32.totalorder %s93, %s94
    %p108 = scmp.eq.s32.totalorder %s16, 7
    %p109 = por %p107, %p108
    %p111 = scmp.ne.s32.totalorder %s94, %s110
    %p112 = scmp.eq.s32.totalorder %s16, 0
    %p113 = por %p111, %p112
    %s114 = ssub.s32 %s17, %s29
    %p115 = scmp.eq.s32.totalorder %s114, 0
    %s117 = sadd.s32 %s116, 1
    %s118 = scalar_select %p115, %s116, %s117
    %p121 = pneg %p115
    %p122 = scmp.eq.s32.totalorder %s10, 7
    %p123 = por %p121, %p122
    %p124 = scmp.ne.s32.totalorder %s116, %s119
    %p125 = scmp.eq.s32.totalorder %s10, 0
    %p126 = por %p124, %p125
    %p127 = scmp.ne.s32.totalorder %s116, %s119
    %p128 = scmp.eq.s32.totalorder %s15, 7
    %p129 = por %p127, %p128
    %p130 = scmp.ne.s32.totalorder %s119, %s120
    %p131 = scmp.eq.s32.totalorder %s15, 0
    %p132 = por %p130, %p131
    %p133 = scmp.ne.s32.totalorder %s119, %s120
    %p134 = scmp.eq.s32.totalorder %s16, 7
    %p135 = por %p133, %p134
    %p137 = scmp.ne.s32.totalorder %s120, %s136
    %p138 = scmp.eq.s32.totalorder %s16, 0
    %p139 = por %p137, %p138
    %s140 = ssub.s32 %s17, %s29
    %s141 = ssub.s32 %s18, %s25
    %s142 = sor.u32 %s140, %s141
    %p143 = scmp.eq.s32.totalorder %s142, 0
    %s145 = sadd.s32 %s144, 1
    %s146 = scalar_select %p143, %s144, %s145
    %p149 = pneg %p143
    %p150 = scmp.eq.s32.totalorder %s10, 7
    %p151 = por %p149, %p150
    %p152 = scmp.ne.s32.totalorder %s144, %s147
    %p153 = scmp.eq.s32.totalorder %s10, 0
    %p154 = por %p152, %p153
    %p155 = scmp.ne.s32.totalorder %s144, %s147
    %p156 = scmp.eq.s32.totalorder %s15, 7
    %p157 = por %p155, %p156
    %p158 = scmp.ne.s32.totalorder %s147, %s148
    %p159 = scmp.eq.s32.totalorder %s15, 0
    %p160 = por %p158, %p159
    %p161 = scmp.ne.s32.totalorder %s147, %s148
    %p162 = scmp.eq.s32.totalorder %s16, 7
    %p163 = por %p161, %p162
    %p165 = scmp.ne.s32.totalorder %s148, %s164
    %p166 = scmp.eq.s32.totalorder %s16, 0
    %p167 = por %p165, %p166
    %p168 = scmp.le.s32.totalorder 1, %s10
    %p169 = scmp.lt.s32.totalorder %s10, 9
    %p170 = pnand %p168, %p169
    %p171 = pneg %p170
    // Predicated region
    $region9: #{transformer_layer_forward.5} parent=5 // pred_check
      _
    $region10: #{transformer_layer_forward.5} parent=5 // pred_check_branch
      %173 = sbr.rel (%p170) target = $region12
    $region11: #{transformer_layer_forward.5} parent=5 // pred_region
      %s174 = ssub.s32 %s10, 1
    $region12: #{transformer_layer_forward.5} parent=5 // pred_fallthru
      _
    %p175 = scmp.lt.s32.totalorder %s10, 8
    // Predicated region
    $region13: #{transformer_layer_forward.5} parent=5 // pred_check
      %p176 = pneg %p175
    $region14: #{transformer_layer_forward.5} parent=5 // pred_check_branch
      %178 = sbr.rel (%p176) target = $region16
    $region15: #{transformer_layer_forward.5} parent=5 // pred_region
      // Predicated region
      $region17: #{transformer_layer_forward.5} parent=15 // pred_check
        %p179 = pneg %p44
      $region18: #{transformer_layer_forward.5} parent=15 // pred_check_branch
        %181 = sbr.rel (%p179) target = $region20
      $region19: #{transformer_layer_forward.5} parent=15 // pred_region
        %p182 = scmp.lt.s32.totalorder %s17, 1
        %s183 = scalar_select %p182, %s17, 1
        %p184 = scmp.lt.s32.totalorder %s18, 3
        %s185 = scalar_select %p184, %s18, 3
        %s186 = smul.addr %s183, 4
        %s187 = sadd.s32 %s185, %s186
        %s188 = smul.addr %s187, 8
        %s189 = scalar_lea.vmem %s0, %s188
      $region20: #{transformer_layer_forward.5} parent=15 // pred_fallthru
        _
      // Predicated region
      $region21: #{transformer_layer_forward.5} parent=15 // pred_check
        %p190 = pneg %p72
      $region22: #{transformer_layer_forward.5} parent=15 // pred_check_branch
        %192 = sbr.rel (%p190) target = $region24
      $region23: #{transformer_layer_forward.5} parent=15 // pred_region
        %p193 = scmp.lt.s32.totalorder %s17, 1
        %s194 = scalar_select %p193, %s17, 1
        %p195 = scmp.lt.s32.totalorder %s18, 3
        %s196 = scalar_select %p195, %s18, 3
        %s197 = smul.addr %s194, 4
        %s198 = sadd.s32 %s196, %s197
        %s199 = smul.addr %s198, 8
        %s200 = scalar_lea.vmem %s1, %s199
      $region24: #{transformer_layer_forward.5} parent=15 // pred_fallthru
        _
      // Predicated region
      $region25: #{transformer_layer_forward.5} parent=15 // pred_check
        %p201 = pneg %p100
      $region26: #{transformer_layer_forward.5} parent=15 // pred_check_branch
        %203 = sbr.rel (%p201) target = $region28
      $region27: #{transformer_layer_forward.5} parent=15 // pred_region
        %p204 = scmp.lt.s32.totalorder %s17, 1
        %s205 = scalar_select %p204, %s17, 1
        %p206 = scmp.lt.s32.totalorder %s18, 3
        %s207 = scalar_select %p206, %s18, 3
        %s208 = smul.addr %s205, 4
        %s209 = sadd.s32 %s207, %s208
        %s210 = smul.addr %s209, 8
        %s211 = scalar_lea.vmem %s2, %s210
      $region28: #{transformer_layer_forward.5} parent=15 // pred_fallthru
        _
      // Predicated region
      $region29: #{transformer_layer_forward.5} parent=15 // pred_check
        %p212 = pneg %p126
      $region30: #{transformer_layer_forward.5} parent=15 // pred_check_branch
        %214 = sbr.rel (%p212) target = $region32
      $region31: #{transformer_layer_forward.5} parent=15 // pred_region
        %p215 = scmp.lt.s32.totalorder %s17, 1
        %s216 = scalar_select %p215, %s17, 1
        %s217 = scalar_lea.vmem %s3, %s216
      $region32: #{transformer_layer_forward.5} parent=15 // pred_fallthru
        _
    $region16: #{transformer_layer_forward.5} parent=5 // pred_fallthru
      _
    %p218 = scmp.le.s32.totalorder 1, %s10
    %p219 = scmp.lt.s32.totalorder %s10, 9
    %p220 = pnand %p218, %p219
    %p221 = pneg %p220
    // Predicated region
    $region33: #{transformer_layer_forward.5} parent=5 // pred_check
      _
    $region34: #{transformer_layer_forward.5} parent=5 // pred_check_branch
      %223 = sbr.rel (%p220) target = $region36
    $region35: #{transformer_layer_forward.5} parent=5 // pred_region
      %s224 = ssub.s32 %s10, 1
      %p225 = scmp.lt.s32.totalorder %s19, 1
      %s226 = scalar_select %p225, %s19, 1
      %p227 = scmp.lt.s32.totalorder %s20, 3
      %s228 = scalar_select %p227, %s20, 3
      %s229 = smul.addr %s226, 4
      %s230 = sadd.s32 %s228, %s229
      %s231 = smul.addr %s230, 8
      %s232 = scalar_lea.vmem %s0, %s231
      %p233 = pneg %p50
      %p234 = pneg %p47
      %p235 = scmp.lt.s32.totalorder %s19, 1
      %s236 = scalar_select %p235, %s19, 1
      %p237 = scmp.lt.s32.totalorder %s20, 3
      %s238 = scalar_select %p237, %s20, 3
      %s239 = smul.addr %s236, 4
      %s240 = sadd.s32 %s238, %s239
      %s241 = smul.addr %s240, 8
      %s242 = scalar_lea.vmem %s1, %s241
      %p243 = pneg %p78
      %p244 = pneg %p75
      %p245 = scmp.lt.s32.totalorder %s19, 1
      %s246 = scalar_select %p245, %s19, 1
      %p247 = scmp.lt.s32.totalorder %s20, 3
      %s248 = scalar_select %p247, %s20, 3
      %s249 = smul.addr %s246, 4
      %s250 = sadd.s32 %s248, %s249
      %s251 = smul.addr %s250, 8
      %s252 = scalar_lea.vmem %s2, %s251
      %p253 = pneg %p106
      %p254 = pneg %p103
      %p255 = scmp.lt.s32.totalorder %s19, 1
      %s256 = scalar_select %p255, %s19, 1
      %s257 = scalar_lea.vmem %s3, %s256
      %p258 = pneg %p132
      %p259 = pneg %p129
      %p260 = pneg %p160
      %p261 = pneg %p157
      %p262 = scmp.lt.s32.totalorder %s19, 1
      %s263 = scalar_select %p262, %s19, 1
      %p264 = scmp.lt.s32.totalorder %s20, 3
      %s265 = scalar_select %p264, %s20, 3
      %s266 = smul.addr %s263, 4
      %s267 = sadd.s32 %s265, %s266
      %s268 = smul.addr %s267, 8
      %s269 = scalar_lea.vmem %s4, %s268
      %p270 = scmp.lt.s32.totalorder %s19, 1
      %s271 = scalar_select %p270, %s19, 1
      %p272 = scmp.lt.s32.totalorder %s20, 3
      %s273 = scalar_select %p272, %s20, 3
      %s274 = smul.addr %s271, 4
      %s275 = sadd.s32 %s273, %s274
      %s276 = smul.addr %s275, 8
      %s277 = scalar_lea.vmem %s0, %s276
      %p278 = scmp.lt.s32.totalorder %s19, 1
      %s279 = scalar_select %p278, %s19, 1
      %p280 = scmp.lt.s32.totalorder %s20, 3
      %s281 = scalar_select %p280, %s20, 3
      %s282 = smul.addr %s279, 4
      %s283 = sadd.s32 %s281, %s282
      %s284 = smul.addr %s283, 8
      %s285 = scalar_lea.vmem %s1, %s284
      %p286 = scmp.lt.s32.totalorder %s19, 1
      %s287 = scalar_select %p286, %s19, 1
      %p288 = scmp.lt.s32.totalorder %s20, 3
      %s289 = scalar_select %p288, %s20, 3
      %s290 = smul.addr %s287, 4
      %s291 = sadd.s32 %s289, %s290
      %s292 = smul.addr %s291, 8
      %s293 = scalar_lea.vmem %s2, %s292
      %p294 = scmp.lt.s32.totalorder %s19, 1
      %s295 = scalar_select %p294, %s19, 1
      %s296 = scalar_lea.vmem %s3, %s295
      %p297 = scmp.lt.s32.totalorder %s19, 1
      %s298 = scalar_select %p297, %s19, 1
      %p299 = scmp.lt.s32.totalorder %s20, 3
      %s300 = scalar_select %p299, %s20, 3
      %s301 = smul.addr %s298, 4
      %s302 = sadd.s32 %s300, %s301
      %s303 = smul.addr %s302, 8
      %s304 = scalar_lea.vmem %s4, %s303
      %v305 = vld [vmem:[%s277] sm:$0xff]
      %v306 = vld [vmem:[%s285] sm:$0xff]
      %v307 = vld [vmem:[%s293] sm:$0xff]
      %vm308 = vcmask 64512
      %v310 = vsel %vm308, %v305, 0
      %v313 = vsel %vm308, %v306, 0
      %315 = vmatprep.subr.mxu0 0.0
      %316 = vmatpush1.xpose.msra.mxu0 %v313
      %317 = vmatprep.subr.mxu0 0.0
      %318 = vmatpush1.xpose.msra.mxu0 0.0
      %319 = vmatprep.subr.mxu0 0.0
      %320 = vmatpush1.xpose.msra.mxu0 0.0
      %321 = vmatprep.subr.mxu0 0.0
      %322 = vmatpush1.xpose.msra.mxu0 0.0
      %323 = vmatprep.subr.mxu0 0.0
      %324 = vmatpush1.xpose.msra.mxu0 0.0
      %325 = vmatprep.subr.mxu0 0.0
      %326 = vmatpush1.xpose.msra.mxu0 0.0
      %327 = vmatprep.subr.mxu0 0.0
      %328 = vmatpush1.xpose.msra.mxu0 0.0
      %329 = vmatprep.subr.mxu0 0.0
      %330 = vmatpush1.xpose.msra.mxu0 0.0
      %331 = vmatprep.subr.mxu0 0.0
      %332 = vmatpush1.xpose.msra.mxu0 0.0
      %333 = vmatprep.subr.mxu0 0.0
      %334 = vmatpush1.xpose.msra.mxu0 0.0
      %335 = vmatprep.subr.mxu0 0.0
      %336 = vmatpush1.xpose.msra.mxu0 0.0
      %337 = vmatprep.subr.mxu0 0.0
      %338 = vmatpush1.xpose.msra.mxu0 0.0
      %339 = vmatprep.subr.mxu0 0.0
      %340 = vmatpush1.xpose.msra.mxu0 0.0
      %341 = vmatprep.subr.mxu0 0.0
      %342 = vmatpush1.xpose.msra.mxu0 0.0
      %343 = vmatprep.subr.mxu0 0.0
      %344 = vmatpush1.xpose.msra.mxu0 0.0
      %345 = vmatprep.subr.mxu0 0.0
      %346 = vmatpush1.xpose.msra.mxu0 0.0
      %347 = vmatprep.subr.mxu0 0.0
      %348 = vmatpush1.xpose.msra.mxu0 0.0
      %349 = vmatprep.subr.mxu0 0.0
      %350 = vmatpush1.xpose.msra.mxu0 0.0
      %351 = vmatprep.subr.mxu0 0.0
      %352 = vmatpush1.xpose.msra.mxu0 0.0
      %353 = vmatprep.subr.mxu0 0.0
      %354 = vmatpush1.xpose.msra.mxu0 0.0
      %355 = vmatprep.subr.mxu0 0.0
      %356 = vmatpush1.xpose.msra.mxu0 0.0
      %357 = vmatprep.subr.mxu0 0.0
      %358 = vmatpush1.xpose.msra.mxu0 0.0
      %359 = vmatprep.subr.mxu0 0.0
      %360 = vmatpush1.xpose.msra.mxu0 0.0
      %361 = vmatprep.subr.mxu0 0.0
      %362 = vmatpush1.xpose.msra.mxu0 0.0
      %363 = vmatprep.subr.mxu0 0.0
      %364 = vmatpush1.xpose.msra.mxu0 0.0
      %365 = vmatprep.subr.mxu0 0.0
      %366 = vmatpush1.xpose.msra.mxu0 0.0
      %367 = vmatprep.subr.mxu0 0.0
      %368 = vmatpush1.xpose.msra.mxu0 0.0
      %369 = vmatprep.subr.mxu0 0.0
      %370 = vmatpush1.xpose.msra.mxu0 0.0
      %371 = vmatprep.subr.mxu0 0.0
      %372 = vmatpush1.xpose.msra.mxu0 0.0
      %373 = vmatprep.subr.mxu0 0.0
      %374 = vmatpush1.xpose.msra.mxu0 0.0
      %375 = vmatprep.subr.mxu0 0.0
      %376 = vmatpush1.xpose.msra.mxu0 0.0
      %377 = vmatprep.subr.mxu0 0.0
      %378 = vmatpush1.xpose.msra.mxu0 0.0
      %379 = vmatprep.mubr.f32.mxu0 0.0
      %380 = vmatmul.mubr.f32.gmra.mrb[0].mxu0 %v310
      %v381 = vpop.f32.mrb[0].mxu0
      %v382 = vadd.f32 0.0, %v381
      %v383 = vpop.f32.mrb[0].mxu0
      %384 = vdwg.mxu0
      %v385 = vmul.f32 %v382, 0.35355338
      %v386 = vld [vmem:[%s296] sm:$0x1]
      %v388 = vlaneseq
      %v389 = vshrl.u32 %v388, 7
      %v390 = vsub.s32 0, %v389
      %v391 = vrot.slane %v386, %v390
      %v393 = vadd.f32 %v385, %v391
      %v394 = vsel %vm308, %v393, -inf
      %395 = vmax.xlane.f32.xlu0 %v394
      %v396 = vpop.xlane.xlu0 %395
      %v397 = vsub.f32 %v393, %v396
      %v398 = vmul.f32 %v397, 1.442695
      %v399 = vpow.pop %v398
      %v400 = vsel %vm308, %v399, 0.0
      %401 = vadd.xlane.f32.xlu0 %v400
      %v402 = vpop.xlane.xlu0 %401
      %v404 = vsel %vm308, %v399, 0
      %406 = vmatprep.subr.mxu0 0.0
      %407 = vmatpush1.msra.mxu0 %v307
      %408 = vmatprep.subr.mxu0 0.0
      %409 = vmatpush1.msra.mxu0 0.0
      %410 = vmatprep.subr.mxu0 0.0
      %411 = vmatpush1.msra.mxu0 0.0
      %412 = vmatprep.subr.mxu0 0.0
      %413 = vmatpush1.msra.mxu0 0.0
      %414 = vmatprep.subr.mxu0 0.0
      %415 = vmatpush1.msra.mxu0 0.0
      %416 = vmatprep.subr.mxu0 0.0
      %417 = vmatpush1.msra.mxu0 0.0
      %418 = vmatprep.subr.mxu0 0.0
      %419 = vmatpush1.msra.mxu0 0.0
      %420 = vmatprep.subr.mxu0 0.0
      %421 = vmatpush1.msra.mxu0 0.0
      %422 = vmatprep.subr.mxu0 0.0
      %423 = vmatpush1.msra.mxu0 0.0
      %424 = vmatprep.subr.mxu0 0.0
      %425 = vmatpush1.msra.mxu0 0.0
      %426 = vmatprep.subr.mxu0 0.0
      %427 = vmatpush1.msra.mxu0 0.0
      %428 = vmatprep.subr.mxu0 0.0
      %429 = vmatpush1.msra.mxu0 0.0
      %430 = vmatprep.subr.mxu0 0.0
      %431 = vmatpush1.msra.mxu0 0.0
      %432 = vmatprep.subr.mxu0 0.0
      %433 = vmatpush1.msra.mxu0 0.0
      %434 = vmatprep.subr.mxu0 0.0
      %435 = vmatpush1.msra.mxu0 0.0
      %436 = vmatprep.subr.mxu0 0.0
      %437 = vmatpush1.msra.mxu0 0.0
      %438 = vmatprep.subr.mxu0 0.0
      %439 = vmatpush1.msra.mxu0 0.0
      %440 = vmatprep.subr.mxu0 0.0
      %441 = vmatpush1.msra.mxu0 0.0
      %442 = vmatprep.subr.mxu0 0.0
      %443 = vmatpush1.msra.mxu0 0.0
      %444 = vmatprep.subr.mxu0 0.0
      %445 = vmatpush1.msra.mxu0 0.0
      %446 = vmatprep.subr.mxu0 0.0
      %447 = vmatpush1.msra.mxu0 0.0
      %448 = vmatprep.subr.mxu0 0.0
      %449 = vmatpush1.msra.mxu0 0.0
      %450 = vmatprep.subr.mxu0 0.0
      %451 = vmatpush1.msra.mxu0 0.0
      %452 = vmatprep.subr.mxu0 0.0
      %453 = vmatpush1.msra.mxu0 0.0
      %454 = vmatprep.subr.mxu0 0.0
      %455 = vmatpush1.msra.mxu0 0.0
      %456 = vmatprep.subr.mxu0 0.0
      %457 = vmatpush1.msra.mxu0 0.0
      %458 = vmatprep.subr.mxu0 0.0
      %459 = vmatpush1.msra.mxu0 0.0
      %460 = vmatprep.subr.mxu0 0.0
      %461 = vmatpush1.msra.mxu0 0.0
      %462 = vmatprep.subr.mxu0 0.0
      %463 = vmatpush1.msra.mxu0 0.0
      %464 = vmatprep.subr.mxu0 0.0
      %465 = vmatpush1.msra.mxu0 0.0
      %466 = vmatprep.subr.mxu0 0.0
      %467 = vmatpush1.msra.mxu0 0.0
      %468 = vmatprep.subr.mxu0 0.0
      %469 = vmatpush1.msra.mxu0 0.0
      %470 = vmatprep.mubr.f32.mxu0 0.0
      %471 = vmatmul.mubr.f32.gmra.mrb[0].mxu0 %v404
      %v472 = vpop.f32.mrb[0].mxu0
      %v473 = vadd.f32 0.0, %v472
      %v474 = vpop.f32.mrb[0].mxu0
      %475 = vdwg.mxu0
      %v476 = vrcp.pop %v402
      %v477 = vmul.f32 1.0, %v476
      %v478 = vmul.f32 %v473, %v477
      %479 = vst.msk [vmem:[%s304] sm:$0xff] %vm308, %v478
      %p480 = scmp.lt.s32.totalorder %s19, 1
      %s481 = scalar_select %p480, %s19, 1
      %p482 = scmp.lt.s32.totalorder %s20, 3
      %s483 = scalar_select %p482, %s20, 3
      %s484 = smul.addr %s481, 4
      %s485 = sadd.s32 %s483, %s484
      %s486 = smul.addr %s485, 8
      %s487 = scalar_lea.vmem %s4, %s486
      // Predicated region
      $region37: #{transformer_layer_forward.5} parent=35 // pred_check
        %p488 = pneg %p157
      $region38: #{transformer_layer_forward.5} parent=35 // pred_check_branch
        %490 = sbr.rel (%p488) target = $region40
      $region39: #{transformer_layer_forward.5} parent=35 // pred_region
        _
      $region40: #{transformer_layer_forward.5} parent=35 // pred_fallthru
        _
    $region36: #{transformer_layer_forward.5} parent=5 // pred_fallthru
      _
    %p491 = scmp.le.s32.totalorder 2, %s10
    // Predicated region
    $region41: #{transformer_layer_forward.5} parent=5 // pred_check
      %p492 = pneg %p491
    $region42: #{transformer_layer_forward.5} parent=5 // pred_check_branch
      %494 = sbr.rel (%p492) target = $region44
    $region43: #{transformer_layer_forward.5} parent=5 // pred_region
      %s495 = ssub.s32 %s10, 2
      // Predicated region
      $region45: #{transformer_layer_forward.5} parent=43 // pred_check
        %p496 = pneg %p163
      $region46: #{transformer_layer_forward.5} parent=43 // pred_check_branch
        %498 = sbr.rel (%p496) target = $region48
      $region47: #{transformer_layer_forward.5} parent=43 // pred_region
        %p499 = scmp.lt.s32.totalorder %s21, 1
        %s500 = scalar_select %p499, %s21, 1
        %p501 = scmp.lt.s32.totalorder %s22, 3
        %s502 = scalar_select %p501, %s22, 3
        %s503 = smul.addr %s500, 4
        %s504 = sadd.s32 %s502, %s503
        %s505 = smul.addr %s504, 8
        %s506 = scalar_lea.vmem %s4, %s505
      $region48: #{transformer_layer_forward.5} parent=43 // pred_fallthru
        _
    $region44: #{transformer_layer_forward.5} parent=5 // pred_fallthru
      _
  $region6: #{transformer_layer_forward.5} parent=0 // loop_footer
    %s14 = sadd.s32 1, %s10
  $region7: #{transformer_layer_forward.5} parent=0 // loop_footer_branch
    %9 = sbr.rel target = $region3
  $region8: #{transformer_layer_forward.5} parent=0 // loop_exit
    _

</llo_original>
